<compile_context>
chip_gen: v6e
topology: v6e:2x2x1
jax: 0.10.0
libtpu: 0.0.40
codegen_flags: <defaults>
</compile_context>

<pallas_src>
import numpy as np

import jax
import jax.numpy as jnp
from jax.experimental import pallas as pl
from jax.experimental.pallas import tpu as pltpu


# ----------------------------- fused Pallas kernel -----------------------------

def _cnn2_fused_kernel(x1_ref, w1cat_ref, b1t_ref, cstack_ref, bcat_ref, b2t_ref,
                       wfc1_ref, bfc1_ref, wfc2_ref, bfc2_ref,
                       wfc3_ref, bfc3_ref, wfc4_ref, bfc4_ref, out_ref):
    """Whole CNN_2 forward for the full (row-stacked) batch, entirely in VMEM.

    9 matmuls total: 1 conv1 (K=864), 1 stacked left-pool/select, 3 per-dy conv2
    taps (dx pre-summed), 1 fused pool2/flatten/fc1, 3 remaining fc layers.
    """
    B = out_ref.shape[0]
    cdt = w1cat_ref.dtype  # bf16 MXU operand dtype; accumulation stays f32

    def dot(a, b):
        return jnp.dot(a, b, preferred_element_type=jnp.float32)

    # ---- conv1: 3->6, k=3, s=1, p=1 as ONE matmul (shifts/im2col done by wrapper) ----
    acc1 = dot(x1_ref[...], w1cat_ref[...]) + b1t_ref[...]          # (B*32, 192) f32

    # ---- pool1 + conv2(s=2) + pool2-H, folded into cstack (left) / bcat (right) ----
    rstack = dot(cstack_ref[...], acc1.astype(cdt))                 # (3*4B, 192) f32
    n = 4 * B
    r = dot(rstack[0:n].astype(cdt), bcat_ref[0])
    r = r + dot(rstack[n:2 * n].astype(cdt), bcat_ref[1])
    r = r + dot(rstack[2 * n:3 * n].astype(cdt), bcat_ref[2])
    r = r + b2t_ref[...]                                            # (4B, 128) f32, rows p*B+b

    # ---- pool2-W + NCHW flatten + fc1: 128-aligned lane concat, then one matmul ----
    rcat = jnp.concatenate([r[p * B:(p + 1) * B] for p in range(4)], axis=1)   # (B, 512)
    h = jnp.maximum(dot(rcat.astype(cdt), wfc1_ref[...]) + bfc1_ref[...], 0.0)

    # ---- fc2 / fc3 / fc4 (+ReLU; final ReLU matches the PyTorch fc_unit) ----
    h = jnp.maximum(dot(h.astype(cdt), wfc2_ref[...]) + bfc2_ref[...], 0.0)
    h = jnp.maximum(dot(h.astype(cdt), wfc3_ref[...]) + bfc3_ref[...], 0.0)
    h = jnp.maximum(dot(h.astype(cdt), wfc4_ref[...]) + bfc4_ref[...], 0.0)

    out_ref[...] = h.astype(out_ref.dtype)                          # one (B, 10) store


# ----------------------------- parameter preparation -----------------------------

def _constant_matrices():
    """Constant pooling / padding / selection matrices (independent of the weights)."""
    ph1 = np.zeros((18, 32), np.float32)            # pool1-H + H zero-pad
    for p in range(16):
        ph1[1 + p, 2 * p] = 0.5
        ph1[1 + p, 2 * p + 1] = 0.5
    pw1 = np.zeros((192, 108), np.float32)          # pool1-W + W zero-pad (lanes = W*6)
    for w in range(32):
        for c in range(6):
            pw1[w * 6 + c, (1 + w // 2) * 6 + c] = 0.5
    rs2 = np.zeros((3, 8, 18), np.float32)          # conv2 stride-2 row selection
    for dy in range(3):
        for j in range(8):
            rs2[dy, j, 2 * j + dy] = 1.0
    sel2 = np.zeros((3, 18, 8), np.float32)         # conv2 stride-2 column selection (per dx)
    for dx in range(3):
        for i in range(8):
            sel2[dx, 2 * i + dx, i] = 1.0
    ph2 = np.zeros((4, 8), np.float32)              # pool2-H
    for p in range(4):
        ph2[p, 2 * p] = 0.5
        ph2[p, 2 * p + 1] = 0.5
    pw2 = np.zeros((128, 64), np.float32)           # pool2-W (lanes = W*16)
    for i in range(8):
        for c in range(16):
            pw2[i * 16 + c, (i // 2) * 16 + c] = 0.5
    fc1_idx = np.zeros((4, 64), np.int32)           # PyTorch NCHW flatten -> (h, w*16+c) layout
    for p in range(4):
        for q in range(4):
            for c in range(16):
                fc1_idx[p, q * 16 + c] = c * 16 + p * 4 + q
    return ph1, pw1, rs2, sel2, ph2, pw2, fc1_idx


def prepare_params(params, batch_size):
    """One-time folding of conv / pool / stride / flatten structure into matmul-ready
    operands (outside the hot path).  Large weights are cast to bf16 to halve DMA."""
    B = int(batch_size)
    f32 = jnp.float32
    wdt = jnp.bfloat16
    ph1, pw1, rs2, sel2, ph2, pw2, fc1_idx = _constant_matrices()

    # conv1: 9 kron-expanded taps K-concatenated into one (864, 192) matrix.
    w1 = params["conv1_w"].astype(f32)                                   # (6,3,3,3) OIHW
    w1_taps = jnp.transpose(w1, (2, 3, 1, 0)).reshape(9, 3, 6)           # [t=dy*3+dx, ic, oc]
    eye32 = jnp.eye(32, dtype=f32)
    w1cat = jnp.einsum("wv,tio->twivo", eye32, w1_taps).reshape(864, 192)
    b1t = jnp.tile(params["conv1_b"].astype(f32), 32).reshape(1, 192)

    # conv2: per-tap (stride-2 col-select x kron weight) pre-summed over dx, with
    # pool1's W-pool/pad folded in:  B_dy = pw1 @ (sum_dx M_{dy,dx})  -> (3,192,128).
    w2 = params["conv2_w"].astype(f32)                                   # (16,6,3,3) OIHW
    w2_taps = jnp.transpose(w2, (2, 3, 1, 0))                            # (3,3,6,16) [dy,dx,ic,oc]
    m_dy = jnp.einsum("dwi,ydco->ywcio", jnp.asarray(sel2), w2_taps).reshape(3, 108, 128)
    bcat = jnp.einsum("ak,ykn->yan", jnp.asarray(pw1), m_dy)             # (3,192,128)
    b2t = jnp.tile(params["conv2_b"].astype(f32), 8).reshape(1, 128)

    # Left side of conv2: pool1-H/pad, stride-2 row select and pool2-H composed into
    # C_dy (4,32), laid out block-diagonally over the batch and stacked over dy so the
    # whole batch is one (12B, 32B) matmul.  Output rows ordered dy-major, p-major, b.
    a_dy = np.einsum("yjh,hm->yjm", rs2, ph1)                            # (3,8,32)
    c_dy = np.einsum("pj,yjm->ypm", ph2, a_dy)                           # (3,4,32)
    cstack = np.zeros((3 * 4 * B, 32 * B), np.float32)
    for y in range(3):
        for b in range(B):
            rows = y * 4 * B + np.arange(4) * B + b
            cols = b * 32 + np.arange(32)
            cstack[np.ix_(rows, cols)] = c_dy[y]

    # fc1: NCHW flatten folded into a row permutation, pool2-W folded in, and the 4
    # per-pooled-row matrices K-stacked into one (512, 128) matrix.
    w1p = params["fc1_w"].astype(f32)[jnp.asarray(fc1_idx).reshape(-1)].reshape(4, 64, 128)
    wfc1cat = jnp.einsum("km,pmn->pkn", jnp.asarray(pw2), w1p).reshape(512, 128)

    return dict(
        w1cat=w1cat.astype(wdt), b1t=b1t,
        cstack=jnp.asarray(cstack).astype(wdt), bcat=bcat.astype(wdt), b2t=b2t,
        wfc1cat=wfc1cat.astype(wdt), bfc1=params["fc1_b"].astype(f32).reshape(1, 128),
        wfc2=params["fc2_w"].astype(wdt), bfc2=params["fc2_b"].astype(f32).reshape(1, 64),
        wfc3=params["fc3_w"].astype(wdt), bfc3=params["fc3_b"].astype(f32).reshape(1, 32),
        wfc4=params["fc4_w"].astype(wdt), bfc4=params["fc4_b"].astype(f32).reshape(1, 10),
    )


def init_params(key):
    """Deterministic init mirroring PyTorch default uniform(-1/sqrt(fan_in), ...)."""
    keys = jax.random.split(key, 12)

    def u(k, shape, fan_in):
        bound = 1.0 / (fan_in ** 0.5)
        return jax.random.uniform(k, shape, jnp.float32, -bound, bound)

    return {
        "conv1_w": u(keys[0], (6, 3, 3, 3), 3 * 9),
        "conv1_b": u(keys[1], (6,), 3 * 9),
        "conv2_w": u(keys[2], (16, 6, 3, 3), 6 * 9),
        "conv2_b": u(keys[3], (16,), 6 * 9),
        "fc1_w": u(keys[4], (256, 128), 256),
        "fc1_b": u(keys[5], (128,), 256),
        "fc2_w": u(keys[6], (128, 64), 128),
        "fc2_b": u(keys[7], (64,), 128),
        "fc3_w": u(keys[8], (64, 32), 64),
        "fc3_b": u(keys[9], (32,), 64),
        "fc4_w": u(keys[10], (32, 10), 32),
        "fc4_b": u(keys[11], (10,), 32),
    }


# ----------------------------- forward pass -----------------------------

def cnn2_forward(prepped, x_nchw):
    B = x_nchw.shape[0]
    assert x_nchw.shape[1:] == (3, 32, 32), x_nchw.shape
    assert prepped["cstack"].shape == (12 * B, 32 * B), "prepare_params batch mismatch"

    # Wrapper glue (one fused XLA chain): NCHW->NHWC, pad by 1, and K-concat the 9
    # (dy,dx)-shifted slabs into a single (B*32, 864) bf16 conv1 operand (~110 KB/img).
    x = jnp.transpose(x_nchw.astype(jnp.float32), (0, 2, 3, 1))          # (B,32,32,3)
    xp = jnp.pad(x, ((0, 0), (1, 1), (1, 1), (0, 0)))                    # (B,34,34,3)
    taps = [xp[:, dy:dy + 32, dx:dx + 32, :].reshape(B, 32, 96)
            for dy in range(3) for dx in range(3)]
    x1 = jnp.concatenate(taps, axis=-1).reshape(B * 32, 864).astype(prepped["w1cat"].dtype)

    operands = (x1, prepped["w1cat"], prepped["b1t"], prepped["cstack"], prepped["bcat"],
                prepped["b2t"], prepped["wfc1cat"], prepped["bfc1"],
                prepped["wfc2"], prepped["bfc2"], prepped["wfc3"], prepped["bfc3"],
                prepped["wfc4"], prepped["bfc4"])

    flops = 2 * (32 * B * 864 * 192 + 12 * B * 32 * B * 192 + 3 * 4 * B * 192 * 128
                 + B * 512 * 128 + B * 128 * 64 + B * 64 * 32 + B * 32 * 10)
    bytes_accessed = sum(int(a.size) * a.dtype.itemsize for a in operands) + B * 10 * 4

    return pl.pallas_call(
        _cnn2_fused_kernel,
        out_shape=jax.ShapeDtypeStruct((B, 10), jnp.float32),
        in_specs=[pl.BlockSpec(memory_space=pltpu.MemorySpace.VMEM)] * len(operands),
        out_specs=pl.BlockSpec(memory_space=pltpu.MemorySpace.VMEM),
        cost_estimate=pl.CostEstimate(flops=int(flops), transcendentals=0,
                                      bytes_accessed=int(bytes_accessed)),
    )(*operands)


# ----------------------------- pure-JAX reference (for verification) -----------------------------

def cnn2_reference(params, x_nchw):
    with jax.default_matmul_precision("float32"):
        def conv(x, w, b, stride):
            y = jax.lax.conv_general_dilated(
                x, w, window_strides=(stride, stride), padding=((1, 1), (1, 1)),
                dimension_numbers=("NCHW", "OIHW", "NCHW"))
            return y + b[None, :, None, None]

        def pool(x):
            s = jax.lax.reduce_window(x, 0.0, jax.lax.add,
                                      (1, 1, 2, 2), (1, 1, 2, 2), "VALID")
            return s * 0.25

        x = x_nchw.astype(jnp.float32)
        x = pool(conv(x, params["conv1_w"], params["conv1_b"], 1))
        x = pool(conv(x, params["conv2_w"], params["conv2_b"], 2))
        x = x.reshape(x.shape[0], -1)
        for i in (1, 2, 3, 4):
            x = jnp.maximum(x @ params[f"fc{i}_w"] + params[f"fc{i}_b"], 0.0)
        return x


if __name__ == "__main__":
    key = jax.random.PRNGKey(0)
    pkey, xkey = jax.random.split(key)
    params = init_params(pkey)
    # Input must be 3x32x32 so the conv stack yields 16*4*4 = 256 features.
    x = jax.random.normal(xkey, (2, 3, 32, 32), dtype=jnp.float32)

    prepped = prepare_params(params, batch_size=x.shape[0])   # one-time weight folding
    fwd = jax.jit(cnn2_forward)
    out = jax.block_until_ready(fwd(prepped, x))

    assert out.shape == (2, 10), out.shape
    assert bool(jnp.all(jnp.isfinite(out)))

    ref = jax.block_until_ready(cnn2_reference(params, x))
    # bf16 MXU operands with f32 accumulation -> tolerance relaxed vs. the pure-f32 run.
    assert jnp.allclose(out, ref, rtol=2e-2, atol=2e-2), float(jnp.max(jnp.abs(out - ref)))

    print("KERNEL_OK")
</pallas_src>

<mosaic_0001>
module attributes {stable_mosaic.version = 11 : i64} {
  func.func @_cnn2_fused_kernel(%arg0: memref<64x864xbf16, #tpu.memory_space<vmem>>, %arg1: memref<864x192xbf16, #tpu.memory_space<vmem>>, %arg2: memref<1x192xf32, #tpu.memory_space<vmem>>, %arg3: memref<24x64xbf16, #tpu.memory_space<vmem>>, %arg4: memref<3x192x128xbf16, #tpu.memory_space<vmem>>, %arg5: memref<1x128xf32, #tpu.memory_space<vmem>>, %arg6: memref<512x128xbf16, #tpu.memory_space<vmem>>, %arg7: memref<1x128xf32, #tpu.memory_space<vmem>>, %arg8: memref<128x64xbf16, #tpu.memory_space<vmem>>, %arg9: memref<1x64xf32, #tpu.memory_space<vmem>>, %arg10: memref<64x32xbf16, #tpu.memory_space<vmem>>, %arg11: memref<1x32xf32, #tpu.memory_space<vmem>>, %arg12: memref<32x10xbf16, #tpu.memory_space<vmem>>, %arg13: memref<1x10xf32, #tpu.memory_space<vmem>>, %arg14: memref<2x10xf32, #tpu.memory_space<vmem>>) attributes {dimension_semantics = [], scalar_prefetch = 0 : i64, scratch_operands = 0 : i64, tpu.core_type = #tpu.core_type<tc>} {
    %c0 = arith.constant 0 : index
    %c0_0 = arith.constant 0 : index
    %0 = vector.load %arg0[%c0, %c0_0] : memref<64x864xbf16, #tpu.memory_space<vmem>>, vector<64x864xbf16>
    %c0_1 = arith.constant 0 : index
    %c0_2 = arith.constant 0 : index
    %1 = vector.load %arg1[%c0_1, %c0_2] : memref<864x192xbf16, #tpu.memory_space<vmem>>, vector<864x192xbf16>
    %cst = arith.constant dense<0.000000e+00> : vector<64x192xf32>
    %2 = tpu.matmul %0, %1, %cst {dimension_numbers = #tpu.dot_dimension_numbers<[1], [0], [0], [1], [0, 0, 1, 1], [], []>} : vector<64x864xbf16>, vector<864x192xbf16>, vector<64x192xf32> -> vector<64x192xf32>
    %c0_3 = arith.constant 0 : index
    %c0_4 = arith.constant 0 : index
    %3 = vector.load %arg2[%c0_3, %c0_4] : memref<1x192xf32, #tpu.memory_space<vmem>>, vector<1x192xf32>
    %4 = vector.broadcast %3 : vector<1x192xf32> to vector<64x192xf32>
    %5 = arith.addf %2, %4 : vector<64x192xf32>
    %c0_5 = arith.constant 0 : index
    %c0_6 = arith.constant 0 : index
    %6 = vector.load %arg3[%c0_5, %c0_6] : memref<24x64xbf16, #tpu.memory_space<vmem>>, vector<24x64xbf16>
    %7 = arith.truncf %5 : vector<64x192xf32> to vector<64x192xbf16>
    %cst_7 = arith.constant dense<0.000000e+00> : vector<24x192xf32>
    %8 = tpu.matmul %6, %7, %cst_7 {dimension_numbers = #tpu.dot_dimension_numbers<[1], [0], [0], [1], [0, 0, 1, 1], [], []>} : vector<24x64xbf16>, vector<64x192xbf16>, vector<24x192xf32> -> vector<24x192xf32>
    %9 = vector.extract_strided_slice %8 {offsets = [0, 0], sizes = [8, 192], strides = [1, 1]} : vector<24x192xf32> to vector<8x192xf32>
    %10 = arith.truncf %9 : vector<8x192xf32> to vector<8x192xbf16>
    %c0_8 = arith.constant 0 : index
    %c0_9 = arith.constant 0 : index
    %c0_10 = arith.constant 0 : index
    %11 = vector.load %arg4[%c0_8, %c0_9, %c0_10] : memref<3x192x128xbf16, #tpu.memory_space<vmem>>, vector<1x192x128xbf16>
    %12 = vector.shape_cast %11 : vector<1x192x128xbf16> to vector<192x128xbf16>
    %cst_11 = arith.constant dense<0.000000e+00> : vector<8x128xf32>
    %13 = tpu.matmul %10, %12, %cst_11 {dimension_numbers = #tpu.dot_dimension_numbers<[1], [0], [0], [1], [0, 0, 1, 1], [], []>} : vector<8x192xbf16>, vector<192x128xbf16>, vector<8x128xf32> -> vector<8x128xf32>
    %14 = vector.extract_strided_slice %8 {offsets = [8, 0], sizes = [8, 192], strides = [1, 1]} : vector<24x192xf32> to vector<8x192xf32>
    %15 = arith.truncf %14 : vector<8x192xf32> to vector<8x192xbf16>
    %c1 = arith.constant 1 : index
    %c0_12 = arith.constant 0 : index
    %c0_13 = arith.constant 0 : index
    %16 = vector.load %arg4[%c1, %c0_12, %c0_13] : memref<3x192x128xbf16, #tpu.memory_space<vmem>>, vector<1x192x128xbf16>
    %17 = vector.shape_cast %16 : vector<1x192x128xbf16> to vector<192x128xbf16>
    %cst_14 = arith.constant dense<0.000000e+00> : vector<8x128xf32>
    %18 = tpu.matmul %15, %17, %cst_14 {dimension_numbers = #tpu.dot_dimension_numbers<[1], [0], [0], [1], [0, 0, 1, 1], [], []>} : vector<8x192xbf16>, vector<192x128xbf16>, vector<8x128xf32> -> vector<8x128xf32>
    %19 = arith.addf %13, %18 : vector<8x128xf32>
    %20 = vector.extract_strided_slice %8 {offsets = [16, 0], sizes = [8, 192], strides = [1, 1]} : vector<24x192xf32> to vector<8x192xf32>
    %21 = arith.truncf %20 : vector<8x192xf32> to vector<8x192xbf16>
    %c2 = arith.constant 2 : index
    %c0_15 = arith.constant 0 : index
    %c0_16 = arith.constant 0 : index
    %22 = vector.load %arg4[%c2, %c0_15, %c0_16] : memref<3x192x128xbf16, #tpu.memory_space<vmem>>, vector<1x192x128xbf16>
    %23 = vector.shape_cast %22 : vector<1x192x128xbf16> to vector<192x128xbf16>
    %cst_17 = arith.constant dense<0.000000e+00> : vector<8x128xf32>
    %24 = tpu.matmul %21, %23, %cst_17 {dimension_numbers = #tpu.dot_dimension_numbers<[1], [0], [0], [1], [0, 0, 1, 1], [], []>} : vector<8x192xbf16>, vector<192x128xbf16>, vector<8x128xf32> -> vector<8x128xf32>
    %25 = arith.addf %19, %24 : vector<8x128xf32>
    %c0_18 = arith.constant 0 : index
    %c0_19 = arith.constant 0 : index
    %26 = vector.load %arg5[%c0_18, %c0_19] : memref<1x128xf32, #tpu.memory_space<vmem>>, vector<1x128xf32>
    %27 = vector.broadcast %26 : vector<1x128xf32> to vector<8x128xf32>
    %28 = arith.addf %25, %27 : vector<8x128xf32>
    %29 = vector.extract_strided_slice %28 {offsets = [0, 0], sizes = [2, 128], strides = [1, 1]} : vector<8x128xf32> to vector<2x128xf32>
    %30 = vector.extract_strided_slice %28 {offsets = [2, 0], sizes = [2, 128], strides = [1, 1]} : vector<8x128xf32> to vector<2x128xf32>
    %31 = vector.extract_strided_slice %28 {offsets = [4, 0], sizes = [2, 128], strides = [1, 1]} : vector<8x128xf32> to vector<2x128xf32>
    %32 = vector.extract_strided_slice %28 {offsets = [6, 0], sizes = [2, 128], strides = [1, 1]} : vector<8x128xf32> to vector<2x128xf32>
    %33 = tpu.concatenate %29, %30, %31, %32 in 1 : vector<2x128xf32>, vector<2x128xf32>, vector<2x128xf32>, vector<2x128xf32> -> vector<2x512xf32>
    %34 = arith.truncf %33 : vector<2x512xf32> to vector<2x512xbf16>
    %c0_20 = arith.constant 0 : index
    %c0_21 = arith.constant 0 : index
    %35 = vector.load %arg6[%c0_20, %c0_21] : memref<512x128xbf16, #tpu.memory_space<vmem>>, vector<512x128xbf16>
    %cst_22 = arith.constant dense<0.000000e+00> : vector<2x128xf32>
    %36 = tpu.matmul %34, %35, %cst_22 {dimension_numbers = #tpu.dot_dimension_numbers<[1], [0], [0], [1], [0, 0, 1, 1], [], []>} : vector<2x512xbf16>, vector<512x128xbf16>, vector<2x128xf32> -> vector<2x128xf32>
    %c0_23 = arith.constant 0 : index
    %c0_24 = arith.constant 0 : index
    %37 = vector.load %arg7[%c0_23, %c0_24] : memref<1x128xf32, #tpu.memory_space<vmem>>, vector<1x128xf32>
    %38 = vector.broadcast %37 : vector<1x128xf32> to vector<2x128xf32>
    %39 = arith.addf %36, %38 : vector<2x128xf32>
    %cst_25 = arith.constant 0.000000e+00 : f32
    %40 = vector.broadcast %cst_25 : f32 to vector<2x128xf32>
    %41 = arith.maximumf %39, %40 : vector<2x128xf32>
    %42 = arith.truncf %41 : vector<2x128xf32> to vector<2x128xbf16>
    %c0_26 = arith.constant 0 : index
    %c0_27 = arith.constant 0 : index
    %43 = vector.load %arg8[%c0_26, %c0_27] : memref<128x64xbf16, #tpu.memory_space<vmem>>, vector<128x64xbf16>
    %cst_28 = arith.constant dense<0.000000e+00> : vector<2x64xf32>
    %44 = tpu.matmul %42, %43, %cst_28 {dimension_numbers = #tpu.dot_dimension_numbers<[1], [0], [0], [1], [0, 0, 1, 1], [], []>} : vector<2x128xbf16>, vector<128x64xbf16>, vector<2x64xf32> -> vector<2x64xf32>
    %c0_29 = arith.constant 0 : index
    %c0_30 = arith.constant 0 : index
    %45 = vector.load %arg9[%c0_29, %c0_30] : memref<1x64xf32, #tpu.memory_space<vmem>>, vector<1x64xf32>
    %46 = vector.broadcast %45 : vector<1x64xf32> to vector<2x64xf32>
    %47 = arith.addf %44, %46 : vector<2x64xf32>
    %cst_31 = arith.constant 0.000000e+00 : f32
    %48 = vector.broadcast %cst_31 : f32 to vector<2x64xf32>
    %49 = arith.maximumf %47, %48 : vector<2x64xf32>
    %50 = arith.truncf %49 : vector<2x64xf32> to vector<2x64xbf16>
    %c0_32 = arith.constant 0 : index
    %c0_33 = arith.constant 0 : index
    %51 = vector.load %arg10[%c0_32, %c0_33] : memref<64x32xbf16, #tpu.memory_space<vmem>>, vector<64x32xbf16>
    %cst_34 = arith.constant dense<0.000000e+00> : vector<2x32xf32>
    %52 = tpu.matmul %50, %51, %cst_34 {dimension_numbers = #tpu.dot_dimension_numbers<[1], [0], [0], [1], [0, 0, 1, 1], [], []>} : vector<2x64xbf16>, vector<64x32xbf16>, vector<2x32xf32> -> vector<2x32xf32>
    %c0_35 = arith.constant 0 : index
    %c0_36 = arith.constant 0 : index
    %53 = vector.load %arg11[%c0_35, %c0_36] : memref<1x32xf32, #tpu.memory_space<vmem>>, vector<1x32xf32>
    %54 = vector.broadcast %53 : vector<1x32xf32> to vector<2x32xf32>
    %55 = arith.addf %52, %54 : vector<2x32xf32>
    %cst_37 = arith.constant 0.000000e+00 : f32
    %56 = vector.broadcast %cst_37 : f32 to vector<2x32xf32>
    %57 = arith.maximumf %55, %56 : vector<2x32xf32>
    %58 = arith.truncf %57 : vector<2x32xf32> to vector<2x32xbf16>
    %c0_38 = arith.constant 0 : index
    %c0_39 = arith.constant 0 : index
    %59 = vector.load %arg12[%c0_38, %c0_39] : memref<32x10xbf16, #tpu.memory_space<vmem>>, vector<32x10xbf16>
    %cst_40 = arith.constant dense<0.000000e+00> : vector<2x10xf32>
    %60 = tpu.matmul %58, %59, %cst_40 {dimension_numbers = #tpu.dot_dimension_numbers<[1], [0], [0], [1], [0, 0, 1, 1], [], []>} : vector<2x32xbf16>, vector<32x10xbf16>, vector<2x10xf32> -> vector<2x10xf32>
    %c0_41 = arith.constant 0 : index
    %c0_42 = arith.constant 0 : index
    %61 = vector.load %arg13[%c0_41, %c0_42] : memref<1x10xf32, #tpu.memory_space<vmem>>, vector<1x10xf32>
    %62 = vector.broadcast %61 : vector<1x10xf32> to vector<2x10xf32>
    %63 = arith.addf %60, %62 : vector<2x10xf32>
    %cst_43 = arith.constant 0.000000e+00 : f32
    %64 = vector.broadcast %cst_43 : f32 to vector<2x10xf32>
    %65 = arith.maximumf %63, %64 : vector<2x10xf32>
    %c0_44 = arith.constant 0 : index
    %c0_45 = arith.constant 0 : index
    %66 = vector.load %arg14[%c0_44, %c0_45] : memref<2x10xf32, #tpu.memory_space<vmem>>, vector<2x10xf32>
    tpu.vector_store %arg14[%c0_44, %c0_45], %65 {strides = array<i32>} : memref<2x10xf32, #tpu.memory_space<vmem>>, vector<2x10xf32>,
    return
  }
}

</mosaic_0001>

<llo_original>
// kernel: cnn2_forward.1
$region0: #{cnn2_forward.1}
  #allocation0 [shape = 'u32[]', space=smem, size = 0x4, offset = 0x4, fixed_abs, tag = 'smem constant byte address 0x4 - core index']
  #allocation1 [shape = 'u32[144,128]{1,0:T(1,128)}', space=vmem, size = 0x12000, scoped, tag = 'internal scratch']
  %s0 = inlined_call_operand.vmem [shape: bf16[64,864], index: 0, kind: input, shape index: {}]
  %s1 = inlined_call_operand.vmem [shape: bf16[864,192], index: 1, kind: input, shape index: {}]
  %s2 = inlined_call_operand.vmem [shape: f32[1,192], index: 2, kind: input, shape index: {}]
  %s3 = inlined_call_operand.vmem [shape: bf16[24,64], index: 3, kind: input, shape index: {}]
  %s4 = inlined_call_operand.vmem [shape: bf16[3,192,128], index: 4, kind: input, shape index: {}]
  %s5 = inlined_call_operand.vmem [shape: f32[1,128], index: 5, kind: input, shape index: {}]
  %s6 = inlined_call_operand.vmem [shape: bf16[512,128], index: 6, kind: input, shape index: {}]
  %s7 = inlined_call_operand.vmem [shape: f32[1,128], index: 7, kind: input, shape index: {}]
  %s8 = inlined_call_operand.vmem [shape: bf16[128,64], index: 8, kind: input, shape index: {}]
  %s9 = inlined_call_operand.vmem [shape: f32[1,64], index: 9, kind: input, shape index: {}]
  %s10 = inlined_call_operand.vmem [shape: bf16[64,32], index: 10, kind: input, shape index: {}]
  %s11 = inlined_call_operand.vmem [shape: f32[1,32], index: 11, kind: input, shape index: {}]
  %s12 = inlined_call_operand.vmem [shape: bf16[32,10], index: 12, kind: input, shape index: {}]
  %s13 = inlined_call_operand.vmem [shape: f32[1,10], index: 13, kind: input, shape index: {}]
  %s14 = inlined_call_operand.hbm [shape: f32[2,10], index: 14, kind: output, shape index: {}]
  %s15 = sld [smem:[#allocation0]]
  $region66: #{cnn2_forward.1} parent=0
    _
  %s17 = ssub.s32 1, %s15
  %s18 = scalar_select 0, %s17, %s15
  $region1: #{cnn2_forward.1} parent=0
    #allocation2 [shape = 'u8[1024]{0}', space=vmem, size = 0x400, scoped, tag = 'output window, operand 0, single buffered']
    #allocation3 [shape = 's32[1]{0}', space=sflag, size = 0x4, scoped, tag = 'scoped memory for cnn2_forward.1']
    %19 = vsyncpa [#allocation3], 0
    // Predicated region
    $region2: #{cnn2_forward.1} parent=1 // pred_check
      _
    $region3: #{cnn2_forward.1} parent=1 // pred_check_branch
      %21 = sbr.rel (0) target = $region5
    $region4: #{cnn2_forward.1} parent=1 // pred_region
      _
    $region5: #{cnn2_forward.1} parent=1 // pred_fallthru
      _
    // Predicated region
    $region6: #{cnn2_forward.1} parent=1 // pred_check
      _
    $region7: #{cnn2_forward.1} parent=1 // pred_check_branch
      %23 = sbr.rel (0) target = $region9
    $region8: #{cnn2_forward.1} parent=1 // pred_region
      _
    $region9: #{cnn2_forward.1} parent=1 // pred_fallthru
      _
    // Predicated region
    $region10: #{cnn2_forward.1} parent=1 // pred_check
      _
    $region11: #{cnn2_forward.1} parent=1 // pred_check_branch
      %25 = sbr.rel (0) target = $region13
    $region12: #{cnn2_forward.1} parent=1 // pred_region
      _
    $region13: #{cnn2_forward.1} parent=1 // pred_fallthru
      _
    // Predicated region
    $region14: #{cnn2_forward.1} parent=1 // pred_check
      _
    $region15: #{cnn2_forward.1} parent=1 // pred_check_branch
      %27 = sbr.rel (0) target = $region17
    $region16: #{cnn2_forward.1} parent=1 // pred_region
      _
    $region17: #{cnn2_forward.1} parent=1 // pred_fallthru
      _
    // Predicated region
    $region18: #{cnn2_forward.1} parent=1 // pred_check
      _
    $region19: #{cnn2_forward.1} parent=1 // pred_check_branch
      %29 = sbr.rel (0) target = $region21
    $region20: #{cnn2_forward.1} parent=1 // pred_region
      _
    $region21: #{cnn2_forward.1} parent=1 // pred_fallthru
      _
    // Predicated region
    $region22: #{cnn2_forward.1} parent=1 // pred_check
      _
    $region23: #{cnn2_forward.1} parent=1 // pred_check_branch
      %31 = sbr.rel (0) target = $region25
    $region24: #{cnn2_forward.1} parent=1 // pred_region
      _
    $region25: #{cnn2_forward.1} parent=1 // pred_fallthru
      _
    // Predicated region
    $region26: #{cnn2_forward.1} parent=1 // pred_check
      _
    $region27: #{cnn2_forward.1} parent=1 // pred_check_branch
      %33 = sbr.rel (0) target = $region29
    $region28: #{cnn2_forward.1} parent=1 // pred_region
      _
    $region29: #{cnn2_forward.1} parent=1 // pred_fallthru
      _
    // Predicated region
    $region30: #{cnn2_forward.1} parent=1 // pred_check
      _
    $region31: #{cnn2_forward.1} parent=1 // pred_check_branch
      %35 = sbr.rel (0) target = $region33
    $region32: #{cnn2_forward.1} parent=1 // pred_region
      _
    $region33: #{cnn2_forward.1} parent=1 // pred_fallthru
      _
    // Predicated region
    $region34: #{cnn2_forward.1} parent=1 // pred_check
      _
    $region35: #{cnn2_forward.1} parent=1 // pred_check_branch
      %37 = sbr.rel (0) target = $region37
    $region36: #{cnn2_forward.1} parent=1 // pred_region
      _
    $region37: #{cnn2_forward.1} parent=1 // pred_fallthru
      _
    // Predicated region
    $region38: #{cnn2_forward.1} parent=1 // pred_check
      _
    $region39: #{cnn2_forward.1} parent=1 // pred_check_branch
      %39 = sbr.rel (0) target = $region41
    $region40: #{cnn2_forward.1} parent=1 // pred_region
      _
    $region41: #{cnn2_forward.1} parent=1 // pred_fallthru
      _
    // Predicated region
    $region42: #{cnn2_forward.1} parent=1 // pred_check
      _
    $region43: #{cnn2_forward.1} parent=1 // pred_check_branch
      %41 = sbr.rel (0) target = $region45
    $region44: #{cnn2_forward.1} parent=1 // pred_region
      _
    $region45: #{cnn2_forward.1} parent=1 // pred_fallthru
      _
    // Predicated region
    $region46: #{cnn2_forward.1} parent=1 // pred_check
      _
    $region47: #{cnn2_forward.1} parent=1 // pred_check_branch
      %43 = sbr.rel (0) target = $region49
    $region48: #{cnn2_forward.1} parent=1 // pred_region
      _
    $region49: #{cnn2_forward.1} parent=1 // pred_fallthru
      _
    // Predicated region
    $region50: #{cnn2_forward.1} parent=1 // pred_check
      _
    $region51: #{cnn2_forward.1} parent=1 // pred_check_branch
      %45 = sbr.rel (0) target = $region53
    $region52: #{cnn2_forward.1} parent=1 // pred_region
      _
    $region53: #{cnn2_forward.1} parent=1 // pred_fallthru
      _
    // Predicated region
    $region54: #{cnn2_forward.1} parent=1 // pred_check
      _
    $region55: #{cnn2_forward.1} parent=1 // pred_check_branch
      %47 = sbr.rel (0) target = $region57
    $region56: #{cnn2_forward.1} parent=1 // pred_region
      _
    $region57: #{cnn2_forward.1} parent=1 // pred_fallthru
      _
    %v49 = vld [vmem:[%s0] sm:$0xff]
    %v50 = vld [vmem:[%s0 + $0x8] sm:$0xff]
    %v51 = vld [vmem:[%s0 + $0x10] sm:$0xff]
    %v52 = vld [vmem:[%s0 + $0x18] sm:$0xf]
    %v53 = vld [vmem:[%s0 + $0x1c] sm:$0xff]
    %v54 = vld [vmem:[%s0 + $0x24] sm:$0xff]
    %v55 = vld [vmem:[%s0 + $0x2c] sm:$0xff]
    %v56 = vld [vmem:[%s0 + $0x34] sm:$0xf]
    %v57 = vld [vmem:[%s0 + $0x38] sm:$0xff]
    %v58 = vld [vmem:[%s0 + $0x40] sm:$0xff]
    %v59 = vld [vmem:[%s0 + $0x48] sm:$0xff]
    %v60 = vld [vmem:[%s0 + $0x50] sm:$0xf]
    %v61 = vld [vmem:[%s0 + $0x54] sm:$0xff]
    %v62 = vld [vmem:[%s0 + $0x5c] sm:$0xff]
    %v63 = vld [vmem:[%s0 + $0x64] sm:$0xff]
    %v64 = vld [vmem:[%s0 + $0x6c] sm:$0xf]
    %v65 = vld [vmem:[%s0 + $0x70] sm:$0xff]
    %v66 = vld [vmem:[%s0 + $0x78] sm:$0xff]
    %v67 = vld [vmem:[%s0 + $0x80] sm:$0xff]
    %v68 = vld [vmem:[%s0 + $0x88] sm:$0xf]
    %v69 = vld [vmem:[%s0 + $0x8c] sm:$0xff]
    %v70 = vld [vmem:[%s0 + $0x94] sm:$0xff]
    %v71 = vld [vmem:[%s0 + $0x9c] sm:$0xff]
    %v72 = vld [vmem:[%s0 + $0xa4] sm:$0xf]
    %v73 = vld [vmem:[%s0 + $0xa8] sm:$0xff]
    %v74 = vld [vmem:[%s0 + $0xb0] sm:$0xff]
    %v75 = vld [vmem:[%s0 + $0xb8] sm:$0xff]
    %v76 = vld [vmem:[%s0 + $0xc0] sm:$0xf]
    %v77 = vld [vmem:[%s0 + $0xc4] sm:$0xff]
    %v78 = vld [vmem:[%s0 + $0xcc] sm:$0xff]
    %v79 = vld [vmem:[%s0 + $0xd4] sm:$0xff]
    %v80 = vld [vmem:[%s0 + $0xdc] sm:$0xf]
    %v81 = vld [vmem:[%s1] sm:$0xff]
    %v82 = vld [vmem:[%s1 + $0x8] sm:$0xff]
    %v83 = vld [vmem:[%s1 + $0x10] sm:$0xff]
    %v84 = vld [vmem:[%s1 + $0x18] sm:$0xff]
    %v85 = vld [vmem:[%s1 + $0x20] sm:$0xff]
    %v86 = vld [vmem:[%s1 + $0x28] sm:$0xff]
    %v87 = vld [vmem:[%s1 + $0x30] sm:$0xff]
    %v88 = vld [vmem:[%s1 + $0x38] sm:$0xff]
    %v89 = vld [vmem:[%s1 + $0x40] sm:$0xff]
    %v90 = vld [vmem:[%s1 + $0x48] sm:$0xff]
    %v91 = vld [vmem:[%s1 + $0x50] sm:$0xff]
    %v92 = vld [vmem:[%s1 + $0x58] sm:$0xff]
    %v93 = vld [vmem:[%s1 + $0x60] sm:$0xff]
    %v94 = vld [vmem:[%s1 + $0x68] sm:$0xff]
    %v95 = vld [vmem:[%s1 + $0x70] sm:$0xff]
    %v96 = vld [vmem:[%s1 + $0x78] sm:$0xff]
    %v97 = vld [vmem:[%s1 + $0x80] sm:$0xff]
    %v98 = vld [vmem:[%s1 + $0x88] sm:$0xff]
    %v99 = vld [vmem:[%s1 + $0x90] sm:$0xff]
    %v100 = vld [vmem:[%s1 + $0x98] sm:$0xff]
    %v101 = vld [vmem:[%s1 + $0xa0] sm:$0xff]
    %v102 = vld [vmem:[%s1 + $0xa8] sm:$0xff]
    %v103 = vld [vmem:[%s1 + $0xb0] sm:$0xff]
    %v104 = vld [vmem:[%s1 + $0xb8] sm:$0xff]
    %v105 = vld [vmem:[%s1 + $0xc0] sm:$0xff]
    %v106 = vld [vmem:[%s1 + $0xc8] sm:$0xff]
    %v107 = vld [vmem:[%s1 + $0xd0] sm:$0xff]
    %v108 = vld [vmem:[%s1 + $0xd8] sm:$0xff]
    %v109 = vld [vmem:[%s1 + $0xe0] sm:$0xff]
    %v110 = vld [vmem:[%s1 + $0xe8] sm:$0xff]
    %v111 = vld [vmem:[%s1 + $0xf0] sm:$0xff]
    %v112 = vld [vmem:[%s1 + $0xf8] sm:$0xff]
    %v113 = vld [vmem:[%s1 + $0x100] sm:$0xff]
    %v114 = vld [vmem:[%s1 + $0x108] sm:$0xff]
    %v115 = vld [vmem:[%s1 + $0x110] sm:$0xff]
    %v116 = vld [vmem:[%s1 + $0x118] sm:$0xff]
    %v117 = vld [vmem:[%s1 + $0x120] sm:$0xff]
    %v118 = vld [vmem:[%s1 + $0x128] sm:$0xff]
    %v119 = vld [vmem:[%s1 + $0x130] sm:$0xff]
    %v120 = vld [vmem:[%s1 + $0x138] sm:$0xff]
    %v121 = vld [vmem:[%s1 + $0x140] sm:$0xff]
    %v122 = vld [vmem:[%s1 + $0x148] sm:$0xff]
    %v123 = vld [vmem:[%s1 + $0x150] sm:$0xff]
    %v124 = vld [vmem:[%s1 + $0x158] sm:$0xff]
    %v125 = vld [vmem:[%s1 + $0x160] sm:$0xff]
    %v126 = vld [vmem:[%s1 + $0x168] sm:$0xff]
    %v127 = vld [vmem:[%s1 + $0x170] sm:$0xff]
    %v128 = vld [vmem:[%s1 + $0x178] sm:$0xff]
    %v129 = vld [vmem:[%s1 + $0x180] sm:$0xff]
    %v130 = vld [vmem:[%s1 + $0x188] sm:$0xff]
    %v131 = vld [vmem:[%s1 + $0x190] sm:$0xff]
    %v132 = vld [vmem:[%s1 + $0x198] sm:$0xff]
    %v133 = vld [vmem:[%s1 + $0x1a0] sm:$0xff]
    %v134 = vld [vmem:[%s1 + $0x1a8] sm:$0xff]
    %v135 = vld [vmem:[%s1 + $0x1b0] sm:$0xff]
    %v136 = vld [vmem:[%s1 + $0x1b8] sm:$0xff]
    %v137 = vld [vmem:[%s1 + $0x1c0] sm:$0xff]
    %v138 = vld [vmem:[%s1 + $0x1c8] sm:$0xff]
    %v139 = vld [vmem:[%s1 + $0x1d0] sm:$0xff]
    %v140 = vld [vmem:[%s1 + $0x1d8] sm:$0xff]
    %v141 = vld [vmem:[%s1 + $0x1e0] sm:$0xff]
    %v142 = vld [vmem:[%s1 + $0x1e8] sm:$0xff]
    %v143 = vld [vmem:[%s1 + $0x1f0] sm:$0xff]
    %v144 = vld [vmem:[%s1 + $0x1f8] sm:$0xff]
    %v145 = vld [vmem:[%s1 + $0x200] sm:$0xff]
    %v146 = vld [vmem:[%s1 + $0x208] sm:$0xff]
    %v147 = vld [vmem:[%s1 + $0x210] sm:$0xff]
    %v148 = vld [vmem:[%s1 + $0x218] sm:$0xff]
    %v149 = vld [vmem:[%s1 + $0x220] sm:$0xff]
    %v150 = vld [vmem:[%s1 + $0x228] sm:$0xff]
    %v151 = vld [vmem:[%s1 + $0x230] sm:$0xff]
    %v152 = vld [vmem:[%s1 + $0x238] sm:$0xff]
    %v153 = vld [vmem:[%s1 + $0x240] sm:$0xff]
    %v154 = vld [vmem:[%s1 + $0x248] sm:$0xff]
    %v155 = vld [vmem:[%s1 + $0x250] sm:$0xff]
    %v156 = vld [vmem:[%s1 + $0x258] sm:$0xff]
    %v157 = vld [vmem:[%s1 + $0x260] sm:$0xff]
    %v158 = vld [vmem:[%s1 + $0x268] sm:$0xff]
    %v159 = vld [vmem:[%s1 + $0x270] sm:$0xff]
    %v160 = vld [vmem:[%s1 + $0x278] sm:$0xff]
    %v161 = vld [vmem:[%s1 + $0x280] sm:$0xff]
    %v162 = vld [vmem:[%s1 + $0x288] sm:$0xff]
    %v163 = vld [vmem:[%s1 + $0x290] sm:$0xff]
    %v164 = vld [vmem:[%s1 + $0x298] sm:$0xff]
    %v165 = vld [vmem:[%s1 + $0x2a0] sm:$0xff]
    %v166 = vld [vmem:[%s1 + $0x2a8] sm:$0xff]
    %v167 = vld [vmem:[%s1 + $0x2b0] sm:$0xff]
    %v168 = vld [vmem:[%s1 + $0x2b8] sm:$0xff]
    %v169 = vld [vmem:[%s1 + $0x2c0] sm:$0xff]
    %v170 = vld [vmem:[%s1 + $0x2c8] sm:$0xff]
    %v171 = vld [vmem:[%s1 + $0x2d0] sm:$0xff]
    %v172 = vld [vmem:[%s1 + $0x2d8] sm:$0xff]
    %v173 = vld [vmem:[%s1 + $0x2e0] sm:$0xff]
    %v174 = vld [vmem:[%s1 + $0x2e8] sm:$0xff]
    %v175 = vld [vmem:[%s1 + $0x2f0] sm:$0xff]
    %v176 = vld [vmem:[%s1 + $0x2f8] sm:$0xff]
    %v177 = vld [vmem:[%s1 + $0x300] sm:$0xff]
    %v178 = vld [vmem:[%s1 + $0x308] sm:$0xff]
    %v179 = vld [vmem:[%s1 + $0x310] sm:$0xff]
    %v180 = vld [vmem:[%s1 + $0x318] sm:$0xff]
    %v181 = vld [vmem:[%s1 + $0x320] sm:$0xff]
    %v182 = vld [vmem:[%s1 + $0x328] sm:$0xff]
    %v183 = vld [vmem:[%s1 + $0x330] sm:$0xff]
    %v184 = vld [vmem:[%s1 + $0x338] sm:$0xff]
    %v185 = vld [vmem:[%s1 + $0x340] sm:$0xff]
    %v186 = vld [vmem:[%s1 + $0x348] sm:$0xff]
    %v187 = vld [vmem:[%s1 + $0x350] sm:$0xff]
    %v188 = vld [vmem:[%s1 + $0x358] sm:$0xff]
    %v189 = vld [vmem:[%s2] sm:$0x3]
    %v191 = vlaneseq
    %v192 = vshrl.u32 %v191, 7
    %v193 = vsub.s32 0, %v192
    %v194 = vrot.slane %v189, %v193
    %v195 = vlaneseq
    %v196 = vshrl.u32 %v195, 7
    %v197 = vsub.s32 1, %v196
    %v198 = vrot.slane %v189, %v197
    %v233 = vunpack.c.l.b16 %v49
    %v234 = vunpack.c.h.b16 %v49
    %v235 = vunpack.c.l.b16 %v50
    %v236 = vunpack.c.h.b16 %v50
    %v237 = vunpack.c.l.b16 %v51
    %v238 = vunpack.c.h.b16 %v51
    %v239 = vunpack.c.l.b16 %v52
    %v240 = vunpack.c.l.b16 %v53
    %v241 = vunpack.c.h.b16 %v53
    %v242 = vunpack.c.l.b16 %v54
    %v243 = vunpack.c.h.b16 %v54
    %v244 = vunpack.c.l.b16 %v55
    %v245 = vunpack.c.h.b16 %v55
    %v246 = vunpack.c.l.b16 %v56
    %v247 = vunpack.c.l.b16 %v57
    %v248 = vunpack.c.h.b16 %v57
    %v249 = vunpack.c.l.b16 %v58
    %v250 = vunpack.c.h.b16 %v58
    %v251 = vunpack.c.l.b16 %v59
    %v252 = vunpack.c.h.b16 %v59
    %v253 = vunpack.c.l.b16 %v60
    %v254 = vunpack.c.l.b16 %v61
    %v255 = vunpack.c.h.b16 %v61
    %v256 = vunpack.c.l.b16 %v62
    %v257 = vunpack.c.h.b16 %v62
    %v258 = vunpack.c.l.b16 %v63
    %v259 = vunpack.c.h.b16 %v63
    %v260 = vunpack.c.l.b16 %v64
    %v261 = vunpack.c.l.b16 %v65
    %v262 = vunpack.c.h.b16 %v65
    %v263 = vunpack.c.l.b16 %v66
    %v264 = vunpack.c.h.b16 %v66
    %v265 = vunpack.c.l.b16 %v67
    %v266 = vunpack.c.h.b16 %v67
    %v267 = vunpack.c.l.b16 %v68
    %v268 = vunpack.c.l.b16 %v69
    %v269 = vunpack.c.h.b16 %v69
    %v270 = vunpack.c.l.b16 %v70
    %v271 = vunpack.c.h.b16 %v70
    %v272 = vunpack.c.l.b16 %v71
    %v273 = vunpack.c.h.b16 %v71
    %v274 = vunpack.c.l.b16 %v72
    %v275 = vunpack.c.l.b16 %v73
    %v276 = vunpack.c.h.b16 %v73
    %v277 = vunpack.c.l.b16 %v74
    %v278 = vunpack.c.h.b16 %v74
    %v279 = vunpack.c.l.b16 %v75
    %v280 = vunpack.c.h.b16 %v75
    %v281 = vunpack.c.l.b16 %v76
    %v282 = vunpack.c.l.b16 %v77
    %v283 = vunpack.c.h.b16 %v77
    %v284 = vunpack.c.l.b16 %v78
    %v285 = vunpack.c.h.b16 %v78
    %v286 = vunpack.c.l.b16 %v79
    %v287 = vunpack.c.h.b16 %v79
    %v288 = vunpack.c.l.b16 %v80
    %v289 = vpack.c.b16 %v240, %v233
    %v290 = vpack.c.b16 %v241, %v234
    %v291 = vpack.c.b16 %v242, %v235
    %v292 = vpack.c.b16 %v243, %v236
    %v293 = vpack.c.b16 %v244, %v237
    %v294 = vpack.c.b16 %v245, %v238
    %v295 = vpack.c.b16 %v246, %v239
    %v296 = vpack.c.b16 %v254, %v247
    %v297 = vpack.c.b16 %v255, %v248
    %v298 = vpack.c.b16 %v256, %v249
    %v299 = vpack.c.b16 %v257, %v250
    %v300 = vpack.c.b16 %v258, %v251
    %v301 = vpack.c.b16 %v259, %v252
    %v302 = vpack.c.b16 %v260, %v253
    %v303 = vpack.c.b16 %v268, %v261
    %v304 = vpack.c.b16 %v269, %v262
    %v305 = vpack.c.b16 %v270, %v263
    %v306 = vpack.c.b16 %v271, %v264
    %v307 = vpack.c.b16 %v272, %v265
    %v308 = vpack.c.b16 %v273, %v266
    %v309 = vpack.c.b16 %v274, %v267
    %v310 = vpack.c.b16 %v282, %v275
    %v311 = vpack.c.b16 %v283, %v276
    %v312 = vpack.c.b16 %v284, %v277
    %v313 = vpack.c.b16 %v285, %v278
    %v314 = vpack.c.b16 %v286, %v279
    %v315 = vpack.c.b16 %v287, %v280
    %v316 = vpack.c.b16 %v288, %v281
    %v449 = vunpack.c.l.b16 %v81
    %v450 = vunpack.c.h.b16 %v81
    %v451 = vunpack.c.l.b16 %v82
    %v452 = vunpack.c.h.b16 %v82
    %v453 = vunpack.c.l.b16 %v83
    %v454 = vunpack.c.h.b16 %v83
    %v455 = vunpack.c.l.b16 %v84
    %v456 = vunpack.c.h.b16 %v84
    %v457 = vunpack.c.l.b16 %v85
    %v458 = vunpack.c.h.b16 %v85
    %v459 = vunpack.c.l.b16 %v86
    %v460 = vunpack.c.h.b16 %v86
    %v461 = vunpack.c.l.b16 %v87
    %v462 = vunpack.c.h.b16 %v87
    %v463 = vunpack.c.l.b16 %v88
    %v464 = vunpack.c.h.b16 %v88
    %v465 = vunpack.c.l.b16 %v89
    %v466 = vunpack.c.h.b16 %v89
    %v467 = vunpack.c.l.b16 %v90
    %v468 = vunpack.c.h.b16 %v90
    %v469 = vunpack.c.l.b16 %v91
    %v470 = vunpack.c.h.b16 %v91
    %v471 = vunpack.c.l.b16 %v92
    %v472 = vunpack.c.h.b16 %v92
    %v473 = vunpack.c.l.b16 %v93
    %v474 = vunpack.c.h.b16 %v93
    %v475 = vunpack.c.l.b16 %v94
    %v476 = vunpack.c.h.b16 %v94
    %v477 = vunpack.c.l.b16 %v95
    %v478 = vunpack.c.h.b16 %v95
    %v479 = vunpack.c.l.b16 %v96
    %v480 = vunpack.c.h.b16 %v96
    %v481 = vunpack.c.l.b16 %v97
    %v482 = vunpack.c.h.b16 %v97
    %v483 = vunpack.c.l.b16 %v98
    %v484 = vunpack.c.h.b16 %v98
    %v485 = vunpack.c.l.b16 %v99
    %v486 = vunpack.c.h.b16 %v99
    %v487 = vunpack.c.l.b16 %v100
    %v488 = vunpack.c.h.b16 %v100
    %v489 = vunpack.c.l.b16 %v101
    %v490 = vunpack.c.h.b16 %v101
    %v491 = vunpack.c.l.b16 %v102
    %v492 = vunpack.c.h.b16 %v102
    %v493 = vunpack.c.l.b16 %v103
    %v494 = vunpack.c.h.b16 %v103
    %v495 = vunpack.c.l.b16 %v104
    %v496 = vunpack.c.h.b16 %v104
    %v497 = vunpack.c.l.b16 %v105
    %v498 = vunpack.c.h.b16 %v105
    %v499 = vunpack.c.l.b16 %v106
    %v500 = vunpack.c.h.b16 %v106
    %v501 = vunpack.c.l.b16 %v107
    %v502 = vunpack.c.h.b16 %v107
    %v503 = vunpack.c.l.b16 %v108
    %v504 = vunpack.c.h.b16 %v108
    %v505 = vunpack.c.l.b16 %v109
    %v506 = vunpack.c.h.b16 %v109
    %v507 = vunpack.c.l.b16 %v110
    %v508 = vunpack.c.h.b16 %v110
    %v509 = vunpack.c.l.b16 %v111
    %v510 = vunpack.c.h.b16 %v111
    %v511 = vunpack.c.l.b16 %v112
    %v512 = vunpack.c.h.b16 %v112
    %v513 = vunpack.c.l.b16 %v113
    %v514 = vunpack.c.h.b16 %v113
    %v515 = vunpack.c.l.b16 %v114
    %v516 = vunpack.c.h.b16 %v114
    %v517 = vunpack.c.l.b16 %v115
    %v518 = vunpack.c.h.b16 %v115
    %v519 = vunpack.c.l.b16 %v116
    %v520 = vunpack.c.h.b16 %v116
    %v521 = vunpack.c.l.b16 %v117
    %v522 = vunpack.c.h.b16 %v117
    %v523 = vunpack.c.l.b16 %v118
    %v524 = vunpack.c.h.b16 %v118
    %v525 = vunpack.c.l.b16 %v119
    %v526 = vunpack.c.h.b16 %v119
    %v527 = vunpack.c.l.b16 %v120
    %v528 = vunpack.c.h.b16 %v120
    %v529 = vunpack.c.l.b16 %v121
    %v530 = vunpack.c.h.b16 %v121
    %v531 = vunpack.c.l.b16 %v122
    %v532 = vunpack.c.h.b16 %v122
    %v533 = vunpack.c.l.b16 %v123
    %v534 = vunpack.c.h.b16 %v123
    %v535 = vunpack.c.l.b16 %v124
    %v536 = vunpack.c.h.b16 %v124
    %v537 = vunpack.c.l.b16 %v125
    %v538 = vunpack.c.h.b16 %v125
    %v539 = vunpack.c.l.b16 %v126
    %v540 = vunpack.c.h.b16 %v126
    %v541 = vunpack.c.l.b16 %v127
    %v542 = vunpack.c.h.b16 %v127
    %v543 = vunpack.c.l.b16 %v128
    %v544 = vunpack.c.h.b16 %v128
    %v545 = vunpack.c.l.b16 %v129
    %v546 = vunpack.c.h.b16 %v129
    %v547 = vunpack.c.l.b16 %v130
    %v548 = vunpack.c.h.b16 %v130
    %v549 = vunpack.c.l.b16 %v131
    %v550 = vunpack.c.h.b16 %v131
    %v551 = vunpack.c.l.b16 %v132
    %v552 = vunpack.c.h.b16 %v132
    %v553 = vunpack.c.l.b16 %v133
    %v554 = vunpack.c.h.b16 %v133
    %v555 = vunpack.c.l.b16 %v134
    %v556 = vunpack.c.h.b16 %v134
    %v557 = vunpack.c.l.b16 %v135
    %v558 = vunpack.c.h.b16 %v135
    %v559 = vunpack.c.l.b16 %v136
    %v560 = vunpack.c.h.b16 %v136
    %v561 = vunpack.c.l.b16 %v137
    %v562 = vunpack.c.h.b16 %v137
    %v563 = vunpack.c.l.b16 %v138
    %v564 = vunpack.c.h.b16 %v138
    %v565 = vunpack.c.l.b16 %v139
    %v566 = vunpack.c.h.b16 %v139
    %v567 = vunpack.c.l.b16 %v140
    %v568 = vunpack.c.h.b16 %v140
    %v569 = vunpack.c.l.b16 %v141
    %v570 = vunpack.c.h.b16 %v141
    %v571 = vunpack.c.l.b16 %v142
    %v572 = vunpack.c.h.b16 %v142
    %v573 = vunpack.c.l.b16 %v143
    %v574 = vunpack.c.h.b16 %v143
    %v575 = vunpack.c.l.b16 %v144
    %v576 = vunpack.c.h.b16 %v144
    %v577 = vunpack.c.l.b16 %v145
    %v578 = vunpack.c.h.b16 %v145
    %v579 = vunpack.c.l.b16 %v146
    %v580 = vunpack.c.h.b16 %v146
    %v581 = vunpack.c.l.b16 %v147
    %v582 = vunpack.c.h.b16 %v147
    %v583 = vunpack.c.l.b16 %v148
    %v584 = vunpack.c.h.b16 %v148
    %v585 = vunpack.c.l.b16 %v149
    %v586 = vunpack.c.h.b16 %v149
    %v587 = vunpack.c.l.b16 %v150
    %v588 = vunpack.c.h.b16 %v150
    %v589 = vunpack.c.l.b16 %v151
    %v590 = vunpack.c.h.b16 %v151
    %v591 = vunpack.c.l.b16 %v152
    %v592 = vunpack.c.h.b16 %v152
    %v593 = vunpack.c.l.b16 %v153
    %v594 = vunpack.c.h.b16 %v153
    %v595 = vunpack.c.l.b16 %v154
    %v596 = vunpack.c.h.b16 %v154
    %v597 = vunpack.c.l.b16 %v155
    %v598 = vunpack.c.h.b16 %v155
    %v599 = vunpack.c.l.b16 %v156
    %v600 = vunpack.c.h.b16 %v156
    %v601 = vunpack.c.l.b16 %v157
    %v602 = vunpack.c.h.b16 %v157
    %v603 = vunpack.c.l.b16 %v158
    %v604 = vunpack.c.h.b16 %v158
    %v605 = vunpack.c.l.b16 %v159
    %v606 = vunpack.c.h.b16 %v159
    %v607 = vunpack.c.l.b16 %v160
    %v608 = vunpack.c.h.b16 %v160
    %v609 = vunpack.c.l.b16 %v161
    %v610 = vunpack.c.h.b16 %v161
    %v611 = vunpack.c.l.b16 %v162
    %v612 = vunpack.c.h.b16 %v162
    %v613 = vunpack.c.l.b16 %v163
    %v614 = vunpack.c.h.b16 %v163
    %v615 = vunpack.c.l.b16 %v164
    %v616 = vunpack.c.h.b16 %v164
    %v617 = vunpack.c.l.b16 %v165
    %v618 = vunpack.c.h.b16 %v165
    %v619 = vunpack.c.l.b16 %v166
    %v620 = vunpack.c.h.b16 %v166
    %v621 = vunpack.c.l.b16 %v167
    %v622 = vunpack.c.h.b16 %v167
    %v623 = vunpack.c.l.b16 %v168
    %v624 = vunpack.c.h.b16 %v168
    %v625 = vunpack.c.l.b16 %v169
    %v626 = vunpack.c.h.b16 %v169
    %v627 = vunpack.c.l.b16 %v170
    %v628 = vunpack.c.h.b16 %v170
    %v629 = vunpack.c.l.b16 %v171
    %v630 = vunpack.c.h.b16 %v171
    %v631 = vunpack.c.l.b16 %v172
    %v632 = vunpack.c.h.b16 %v172
    %v633 = vunpack.c.l.b16 %v173
    %v634 = vunpack.c.h.b16 %v173
    %v635 = vunpack.c.l.b16 %v174
    %v636 = vunpack.c.h.b16 %v174
    %v637 = vunpack.c.l.b16 %v175
    %v638 = vunpack.c.h.b16 %v175
    %v639 = vunpack.c.l.b16 %v176
    %v640 = vunpack.c.h.b16 %v176
    %v641 = vunpack.c.l.b16 %v177
    %v642 = vunpack.c.h.b16 %v177
    %v643 = vunpack.c.l.b16 %v178
    %v644 = vunpack.c.h.b16 %v178
    %v645 = vunpack.c.l.b16 %v179
    %v646 = vunpack.c.h.b16 %v179
    %v647 = vunpack.c.l.b16 %v180
    %v648 = vunpack.c.h.b16 %v180
    %v649 = vunpack.c.l.b16 %v181
    %v650 = vunpack.c.h.b16 %v181
    %v651 = vunpack.c.l.b16 %v182
    %v652 = vunpack.c.h.b16 %v182
    %v653 = vunpack.c.l.b16 %v183
    %v654 = vunpack.c.h.b16 %v183
    %v655 = vunpack.c.l.b16 %v184
    %v656 = vunpack.c.h.b16 %v184
    %v657 = vunpack.c.l.b16 %v185
    %v658 = vunpack.c.h.b16 %v185
    %v659 = vunpack.c.l.b16 %v186
    %v660 = vunpack.c.h.b16 %v186
    %v661 = vunpack.c.l.b16 %v187
    %v662 = vunpack.c.h.b16 %v187
    %v663 = vunpack.c.l.b16 %v188
    %v664 = vunpack.c.h.b16 %v188
    %v665 = vpack.c.b16 %v451, %v449
    %v666 = vpack.c.b16 %v452, %v450
    %v667 = vpack.c.b16 %v455, %v453
    %v668 = vpack.c.b16 %v456, %v454
    %v669 = vpack.c.b16 %v459, %v457
    %v670 = vpack.c.b16 %v460, %v458
    %v671 = vpack.c.b16 %v463, %v461
    %v672 = vpack.c.b16 %v464, %v462
    %v673 = vpack.c.b16 %v467, %v465
    %v674 = vpack.c.b16 %v468, %v466
    %v675 = vpack.c.b16 %v471, %v469
    %v676 = vpack.c.b16 %v472, %v470
    %v677 = vpack.c.b16 %v475, %v473
    %v678 = vpack.c.b16 %v476, %v474
    %v679 = vpack.c.b16 %v479, %v477
    %v680 = vpack.c.b16 %v480, %v478
    %v681 = vpack.c.b16 %v483, %v481
    %v682 = vpack.c.b16 %v484, %v482
    %v683 = vpack.c.b16 %v487, %v485
    %v684 = vpack.c.b16 %v488, %v486
    %v685 = vpack.c.b16 %v491, %v489
    %v686 = vpack.c.b16 %v492, %v490
    %v687 = vpack.c.b16 %v495, %v493
    %v688 = vpack.c.b16 %v496, %v494
    %v689 = vpack.c.b16 %v499, %v497
    %v690 = vpack.c.b16 %v500, %v498
    %v691 = vpack.c.b16 %v503, %v501
    %v692 = vpack.c.b16 %v504, %v502
    %v693 = vpack.c.b16 %v507, %v505
    %v694 = vpack.c.b16 %v508, %v506
    %v695 = vpack.c.b16 %v511, %v509
    %v696 = vpack.c.b16 %v512, %v510
    %v697 = vpack.c.b16 %v515, %v513
    %v698 = vpack.c.b16 %v516, %v514
    %v699 = vpack.c.b16 %v519, %v517
    %v700 = vpack.c.b16 %v520, %v518
    %v701 = vpack.c.b16 %v523, %v521
    %v702 = vpack.c.b16 %v524, %v522
    %v703 = vpack.c.b16 %v527, %v525
    %v704 = vpack.c.b16 %v528, %v526
    %v705 = vpack.c.b16 %v531, %v529
    %v706 = vpack.c.b16 %v532, %v530
    %v707 = vpack.c.b16 %v535, %v533
    %v708 = vpack.c.b16 %v536, %v534
    %v709 = vpack.c.b16 %v539, %v537
    %v710 = vpack.c.b16 %v540, %v538
    %v711 = vpack.c.b16 %v543, %v541
    %v712 = vpack.c.b16 %v544, %v542
    %v713 = vpack.c.b16 %v547, %v545
    %v714 = vpack.c.b16 %v548, %v546
    %v715 = vpack.c.b16 %v551, %v549
    %v716 = vpack.c.b16 %v552, %v550
    %v717 = vpack.c.b16 %v555, %v553
    %v718 = vpack.c.b16 %v556, %v554
    %v719 = vpack.c.b16 %v559, %v557
    %v720 = vpack.c.b16 %v560, %v558
    %v721 = vpack.c.b16 %v563, %v561
    %v722 = vpack.c.b16 %v564, %v562
    %v723 = vpack.c.b16 %v567, %v565
    %v724 = vpack.c.b16 %v568, %v566
    %v725 = vpack.c.b16 %v571, %v569
    %v726 = vpack.c.b16 %v572, %v570
    %v727 = vpack.c.b16 %v575, %v573
    %v728 = vpack.c.b16 %v576, %v574
    %v729 = vpack.c.b16 %v579, %v577
    %v730 = vpack.c.b16 %v580, %v578
    %v731 = vpack.c.b16 %v583, %v581
    %v732 = vpack.c.b16 %v584, %v582
    %v733 = vpack.c.b16 %v587, %v585
    %v734 = vpack.c.b16 %v588, %v586
    %v735 = vpack.c.b16 %v591, %v589
    %v736 = vpack.c.b16 %v592, %v590
    %v737 = vpack.c.b16 %v595, %v593
    %v738 = vpack.c.b16 %v596, %v594
    %v739 = vpack.c.b16 %v599, %v597
    %v740 = vpack.c.b16 %v600, %v598
    %v741 = vpack.c.b16 %v603, %v601
    %v742 = vpack.c.b16 %v604, %v602
    %v743 = vpack.c.b16 %v607, %v605
    %v744 = vpack.c.b16 %v608, %v606
    %v745 = vpack.c.b16 %v611, %v609
    %v746 = vpack.c.b16 %v612, %v610
    %v747 = vpack.c.b16 %v615, %v613
    %v748 = vpack.c.b16 %v616, %v614
    %v749 = vpack.c.b16 %v619, %v617
    %v750 = vpack.c.b16 %v620, %v618
    %v751 = vpack.c.b16 %v623, %v621
    %v752 = vpack.c.b16 %v624, %v622
    %v753 = vpack.c.b16 %v627, %v625
    %v754 = vpack.c.b16 %v628, %v626
    %v755 = vpack.c.b16 %v631, %v629
    %v756 = vpack.c.b16 %v632, %v630
    %v757 = vpack.c.b16 %v635, %v633
    %v758 = vpack.c.b16 %v636, %v634
    %v759 = vpack.c.b16 %v639, %v637
    %v760 = vpack.c.b16 %v640, %v638
    %v761 = vpack.c.b16 %v643, %v641
    %v762 = vpack.c.b16 %v644, %v642
    %v763 = vpack.c.b16 %v647, %v645
    %v764 = vpack.c.b16 %v648, %v646
    %v765 = vpack.c.b16 %v651, %v649
    %v766 = vpack.c.b16 %v652, %v650
    %v767 = vpack.c.b16 %v655, %v653
    %v768 = vpack.c.b16 %v656, %v654
    %v769 = vpack.c.b16 %v659, %v657
    %v770 = vpack.c.b16 %v660, %v658
    %v771 = vpack.c.b16 %v663, %v661
    %v772 = vpack.c.b16 %v664, %v662
    %vm881 = vcmask 785408
    %v883 = vsel %vm881, %v295, 0
    %v886 = vsel %vm881, %v302, 0
    %v889 = vsel %vm881, %v309, 0
    %v892 = vsel %vm881, %v316, 0
    %894 = vmatprep.subr.bf16.mxu0 %v680
    %895 = vmatpush1.bf16.msra.mxu0 %v679
    %896 = vmatprep.subr.bf16.mxu0 %v678
    %897 = vmatpush1.bf16.msra.mxu0 %v677
    %898 = vmatprep.subr.bf16.mxu0 %v676
    %899 = vmatpush1.bf16.msra.mxu0 %v675
    %900 = vmatprep.subr.bf16.mxu0 %v674
    %901 = vmatpush1.bf16.msra.mxu0 %v673
    %902 = vmatprep.subr.bf16.mxu0 %v672
    %903 = vmatpush1.bf16.msra.mxu0 %v671
    %904 = vmatprep.subr.bf16.mxu0 %v670
    %905 = vmatpush1.bf16.msra.mxu0 %v669
    %906 = vmatprep.subr.bf16.mxu0 %v668
    %907 = vmatpush1.bf16.msra.mxu0 %v667
    %908 = vmatprep.subr.bf16.mxu0 %v666
    %909 = vmatpush1.bf16.msra.mxu0 %v665
    %910 = vmatprep.subr.bf16.mxu0 %v696
    %911 = vmatpush2.bf16.msra.mxu0 %v695
    %912 = vmatprep.subr.bf16.mxu0 %v694
    %913 = vmatpush2.bf16.msra.mxu0 %v693
    %914 = vmatprep.subr.bf16.mxu0 %v692
    %915 = vmatpush2.bf16.msra.mxu0 %v691
    %916 = vmatprep.subr.bf16.mxu0 %v690
    %917 = vmatpush2.bf16.msra.mxu0 %v689
    %918 = vmatprep.subr.bf16.mxu0 %v688
    %919 = vmatpush2.bf16.msra.mxu0 %v687
    %920 = vmatprep.subr.bf16.mxu0 %v686
    %921 = vmatpush2.bf16.msra.mxu0 %v685
    %922 = vmatprep.subr.bf16.mxu0 %v684
    %923 = vmatpush2.bf16.msra.mxu0 %v683
    %924 = vmatprep.subr.bf16.mxu0 %v682
    %925 = vmatpush2.bf16.msra.mxu0 %v681
    %926 = vmatprep.mubr.bf16.mxu0 %v290
    %927 = vmatmul.mubr.bf16.gmra.mxu0 %v289
    %v928 = vpop.f32.mrf.mxu0
    %v929 = vadd.f32 %v194, %v928
    %v930 = vpop.f32.mrf.mxu0
    %v931 = vadd.f32 %v198, %v930
    %v932 = vpop.f32.mrf.mxu0
    %v933 = vadd.f32 %v194, %v932
    %v934 = vpop.f32.mrf.mxu0
    %v935 = vadd.f32 %v198, %v934
    %936 = vmatprep.mubr.bf16.mxu0 %v297
    %937 = vmatmul.mubr.bf16.gmra.mxu0 %v296
    %v938 = vpop.f32.mrf.mxu0
    %v939 = vadd.f32 %v194, %v938
    %v940 = vpop.f32.mrf.mxu0
    %v941 = vadd.f32 %v198, %v940
    %v942 = vpop.f32.mrf.mxu0
    %v943 = vadd.f32 %v194, %v942
    %v944 = vpop.f32.mrf.mxu0
    %v945 = vadd.f32 %v198, %v944
    %946 = vmatprep.mubr.bf16.mxu0 %v304
    %947 = vmatmul.mubr.bf16.gmra.mxu0 %v303
    %v948 = vpop.f32.mrf.mxu0
    %v949 = vadd.f32 %v194, %v948
    %v950 = vpop.f32.mrf.mxu0
    %v951 = vadd.f32 %v198, %v950
    %v952 = vpop.f32.mrf.mxu0
    %v953 = vadd.f32 %v194, %v952
    %v954 = vpop.f32.mrf.mxu0
    %v955 = vadd.f32 %v198, %v954
    %956 = vmatprep.mubr.bf16.mxu0 %v311
    %957 = vmatmul.mubr.bf16.gmra.mxu0 %v310
    %v958 = vpop.f32.mrf.mxu0
    %v959 = vadd.f32 %v194, %v958
    %v960 = vpop.f32.mrf.mxu0
    %v961 = vadd.f32 %v198, %v960
    %v962 = vpop.f32.mrf.mxu0
    %v963 = vadd.f32 %v194, %v962
    %v964 = vpop.f32.mrf.mxu0
    %v965 = vadd.f32 %v198, %v964
    %966 = vdwg.mxu0
    %967 = vmatprep.subr.bf16.mxu0 %v712
    %968 = vmatpush1.bf16.msra.mxu0 %v711
    %969 = vmatprep.subr.bf16.mxu0 %v710
    %970 = vmatpush1.bf16.msra.mxu0 %v709
    %971 = vmatprep.subr.bf16.mxu0 %v708
    %972 = vmatpush1.bf16.msra.mxu0 %v707
    %973 = vmatprep.subr.bf16.mxu0 %v706
    %974 = vmatpush1.bf16.msra.mxu0 %v705
    %975 = vmatprep.subr.bf16.mxu0 %v704
    %976 = vmatpush1.bf16.msra.mxu0 %v703
    %977 = vmatprep.subr.bf16.mxu0 %v702
    %978 = vmatpush1.bf16.msra.mxu0 %v701
    %979 = vmatprep.subr.bf16.mxu0 %v700
    %980 = vmatpush1.bf16.msra.mxu0 %v699
    %981 = vmatprep.subr.bf16.mxu0 %v698
    %982 = vmatpush1.bf16.msra.mxu0 %v697
    %983 = vmatprep.subr.bf16.mxu0 %v728
    %984 = vmatpush2.bf16.msra.mxu0 %v727
    %985 = vmatprep.subr.bf16.mxu0 %v726
    %986 = vmatpush2.bf16.msra.mxu0 %v725
    %987 = vmatprep.subr.bf16.mxu0 %v724
    %988 = vmatpush2.bf16.msra.mxu0 %v723
    %989 = vmatprep.subr.bf16.mxu0 %v722
    %990 = vmatpush2.bf16.msra.mxu0 %v721
    %991 = vmatprep.subr.bf16.mxu0 %v720
    %992 = vmatpush2.bf16.msra.mxu0 %v719
    %993 = vmatprep.subr.bf16.mxu0 %v718
    %994 = vmatpush2.bf16.msra.mxu0 %v717
    %995 = vmatprep.subr.bf16.mxu0 %v716
    %996 = vmatpush2.bf16.msra.mxu0 %v715
    %997 = vmatprep.subr.bf16.mxu0 %v714
    %998 = vmatpush2.bf16.msra.mxu0 %v713
    %999 = vmatprep.mubr.bf16.mxu0 %v292
    %1000 = vmatmul.mubr.bf16.gmra.mxu0 %v291
    %v1001 = vpop.f32.mrf.mxu0
    %v1002 = vadd.f32 %v929, %v1001
    %v1003 = vpop.f32.mrf.mxu0
    %v1004 = vadd.f32 %v931, %v1003
    %v1005 = vpop.f32.mrf.mxu0
    %v1006 = vadd.f32 %v933, %v1005
    %v1007 = vpop.f32.mrf.mxu0
    %v1008 = vadd.f32 %v935, %v1007
    %1009 = vmatprep.mubr.bf16.mxu0 %v299
    %1010 = vmatmul.mubr.bf16.gmra.mxu0 %v298
    %v1011 = vpop.f32.mrf.mxu0
    %v1012 = vadd.f32 %v939, %v1011
    %v1013 = vpop.f32.mrf.mxu0
    %v1014 = vadd.f32 %v941, %v1013
    %v1015 = vpop.f32.mrf.mxu0
    %v1016 = vadd.f32 %v943, %v1015
    %v1017 = vpop.f32.mrf.mxu0
    %v1018 = vadd.f32 %v945, %v1017
    %1019 = vmatprep.mubr.bf16.mxu0 %v306
    %1020 = vmatmul.mubr.bf16.gmra.mxu0 %v305
    %v1021 = vpop.f32.mrf.mxu0
    %v1022 = vadd.f32 %v949, %v1021
    %v1023 = vpop.f32.mrf.mxu0
    %v1024 = vadd.f32 %v951, %v1023
    %v1025 = vpop.f32.mrf.mxu0
    %v1026 = vadd.f32 %v953, %v1025
    %v1027 = vpop.f32.mrf.mxu0
    %v1028 = vadd.f32 %v955, %v1027
    %1029 = vmatprep.mubr.bf16.mxu0 %v313
    %1030 = vmatmul.mubr.bf16.gmra.mxu0 %v312
    %v1031 = vpop.f32.mrf.mxu0
    %v1032 = vadd.f32 %v959, %v1031
    %v1033 = vpop.f32.mrf.mxu0
    %v1034 = vadd.f32 %v961, %v1033
    %v1035 = vpop.f32.mrf.mxu0
    %v1036 = vadd.f32 %v963, %v1035
    %v1037 = vpop.f32.mrf.mxu0
    %v1038 = vadd.f32 %v965, %v1037
    %1039 = vdwg.mxu0
    %1040 = vmatprep.subr.bf16.mxu0 %v744
    %1041 = vmatpush1.bf16.msra.mxu0 %v743
    %1042 = vmatprep.subr.bf16.mxu0 %v742
    %1043 = vmatpush1.bf16.msra.mxu0 %v741
    %1044 = vmatprep.subr.bf16.mxu0 %v740
    %1045 = vmatpush1.bf16.msra.mxu0 %v739
    %1046 = vmatprep.subr.bf16.mxu0 %v738
    %1047 = vmatpush1.bf16.msra.mxu0 %v737
    %1048 = vmatprep.subr.bf16.mxu0 %v736
    %1049 = vmatpush1.bf16.msra.mxu0 %v735
    %1050 = vmatprep.subr.bf16.mxu0 %v734
    %1051 = vmatpush1.bf16.msra.mxu0 %v733
    %1052 = vmatprep.subr.bf16.mxu0 %v732
    %1053 = vmatpush1.bf16.msra.mxu0 %v731
    %1054 = vmatprep.subr.bf16.mxu0 %v730
    %1055 = vmatpush1.bf16.msra.mxu0 %v729
    %1056 = vmatprep.subr.bf16.mxu0 %v760
    %1057 = vmatpush2.bf16.msra.mxu0 %v759
    %1058 = vmatprep.subr.bf16.mxu0 %v758
    %1059 = vmatpush2.bf16.msra.mxu0 %v757
    %1060 = vmatprep.subr.bf16.mxu0 %v756
    %1061 = vmatpush2.bf16.msra.mxu0 %v755
    %1062 = vmatprep.subr.bf16.mxu0 %v754
    %1063 = vmatpush2.bf16.msra.mxu0 %v753
    %1064 = vmatprep.subr.bf16.mxu0 %v752
    %1065 = vmatpush2.bf16.msra.mxu0 %v751
    %1066 = vmatprep.subr.bf16.mxu0 %v750
    %1067 = vmatpush2.bf16.msra.mxu0 %v749
    %1068 = vmatprep.subr.bf16.mxu0 %v748
    %1069 = vmatpush2.bf16.msra.mxu0 %v747
    %1070 = vmatprep.subr.bf16.mxu0 %v746
    %1071 = vmatpush2.bf16.msra.mxu0 %v745
    %1072 = vmatprep.mubr.bf16.mxu0 %v294
    %1073 = vmatmul.mubr.bf16.gmra.mxu0 %v293
    %v1074 = vpop.f32.mrf.mxu0
    %v1075 = vadd.f32 %v1002, %v1074
    %v1076 = vpop.f32.mrf.mxu0
    %v1077 = vadd.f32 %v1004, %v1076
    %v1078 = vpop.f32.mrf.mxu0
    %v1079 = vadd.f32 %v1006, %v1078
    %v1080 = vpop.f32.mrf.mxu0
    %v1081 = vadd.f32 %v1008, %v1080
    %1082 = vmatprep.mubr.bf16.mxu0 %v301
    %1083 = vmatmul.mubr.bf16.gmra.mxu0 %v300
    %v1084 = vpop.f32.mrf.mxu0
    %v1085 = vadd.f32 %v1012, %v1084
    %v1086 = vpop.f32.mrf.mxu0
    %v1087 = vadd.f32 %v1014, %v1086
    %v1088 = vpop.f32.mrf.mxu0
    %v1089 = vadd.f32 %v1016, %v1088
    %v1090 = vpop.f32.mrf.mxu0
    %v1091 = vadd.f32 %v1018, %v1090
    %1092 = vmatprep.mubr.bf16.mxu0 %v308
    %1093 = vmatmul.mubr.bf16.gmra.mxu0 %v307
    %v1094 = vpop.f32.mrf.mxu0
    %v1095 = vadd.f32 %v1022, %v1094
    %v1096 = vpop.f32.mrf.mxu0
    %v1097 = vadd.f32 %v1024, %v1096
    %v1098 = vpop.f32.mrf.mxu0
    %v1099 = vadd.f32 %v1026, %v1098
    %v1100 = vpop.f32.mrf.mxu0
    %v1101 = vadd.f32 %v1028, %v1100
    %1102 = vmatprep.mubr.bf16.mxu0 %v315
    %1103 = vmatmul.mubr.bf16.gmra.mxu0 %v314
    %v1104 = vpop.f32.mrf.mxu0
    %v1105 = vadd.f32 %v1032, %v1104
    %v1106 = vpop.f32.mrf.mxu0
    %v1107 = vadd.f32 %v1034, %v1106
    %v1108 = vpop.f32.mrf.mxu0
    %v1109 = vadd.f32 %v1036, %v1108
    %v1110 = vpop.f32.mrf.mxu0
    %v1111 = vadd.f32 %v1038, %v1110
    %1112 = vdwg.mxu0
    %1113 = vmatprep.subr.bf16.mxu0 0
    %1114 = vmatpush1.bf16.msra.mxu0 0
    %1115 = vmatprep.subr.bf16.mxu0 0
    %1116 = vmatpush1.bf16.msra.mxu0 0
    %1117 = vmatprep.subr.bf16.mxu0 %v772
    %1118 = vmatpush1.bf16.msra.mxu0 %v771
    %1119 = vmatprep.subr.bf16.mxu0 %v770
    %1120 = vmatpush1.bf16.msra.mxu0 %v769
    %1121 = vmatprep.subr.bf16.mxu0 %v768
    %1122 = vmatpush1.bf16.msra.mxu0 %v767
    %1123 = vmatprep.subr.bf16.mxu0 %v766
    %1124 = vmatpush1.bf16.msra.mxu0 %v765
    %1125 = vmatprep.subr.bf16.mxu0 %v764
    %1126 = vmatpush1.bf16.msra.mxu0 %v763
    %1127 = vmatprep.subr.bf16.mxu0 %v762
    %1128 = vmatpush1.bf16.msra.mxu0 %v761
    %1129 = vmatprep.subr.bf16.mxu0 0
    %1130 = vmatpush2.bf16.msra.mxu0 0
    %1131 = vmatprep.subr.bf16.mxu0 0
    %1132 = vmatpush2.bf16.msra.mxu0 0
    %1133 = vmatprep.subr.bf16.mxu0 0
    %1134 = vmatpush2.bf16.msra.mxu0 0
    %1135 = vmatprep.subr.bf16.mxu0 0
    %1136 = vmatpush2.bf16.msra.mxu0 0
    %1137 = vmatprep.subr.bf16.mxu0 0
    %1138 = vmatpush2.bf16.msra.mxu0 0
    %1139 = vmatprep.subr.bf16.mxu0 0
    %1140 = vmatpush2.bf16.msra.mxu0 0
    %1141 = vmatprep.subr.bf16.mxu0 0
    %1142 = vmatpush2.bf16.msra.mxu0 0
    %1143 = vmatprep.subr.bf16.mxu0 0
    %1144 = vmatpush2.bf16.msra.mxu0 0
    %1145 = vmatprep.mubr.bf16.mxu0 0
    %1146 = vmatmul.mubr.bf16.gmra.mxu0 %v883
    %v1147 = vpop.f32.mrf.mxu0
    %v1148 = vadd.f32 %v1075, %v1147
    %v1149 = vpop.f32.mrf.mxu0
    %v1150 = vadd.f32 %v1077, %v1149
    %v1151 = vpop.f32.mrf.mxu0
    %v1152 = vadd.f32 %v1079, %v1151
    %v1153 = vpop.f32.mrf.mxu0
    %v1154 = vadd.f32 %v1081, %v1153
    %1155 = vmatprep.mubr.bf16.mxu0 0
    %1156 = vmatmul.mubr.bf16.gmra.mxu0 %v886
    %v1157 = vpop.f32.mrf.mxu0
    %v1158 = vadd.f32 %v1085, %v1157
    %v1159 = vpop.f32.mrf.mxu0
    %v1160 = vadd.f32 %v1087, %v1159
    %v1161 = vpop.f32.mrf.mxu0
    %v1162 = vadd.f32 %v1089, %v1161
    %v1163 = vpop.f32.mrf.mxu0
    %v1164 = vadd.f32 %v1091, %v1163
    %1165 = vmatprep.mubr.bf16.mxu0 0
    %1166 = vmatmul.mubr.bf16.gmra.mxu0 %v889
    %v1167 = vpop.f32.mrf.mxu0
    %v1168 = vadd.f32 %v1095, %v1167
    %v1169 = vpop.f32.mrf.mxu0
    %v1170 = vadd.f32 %v1097, %v1169
    %v1171 = vpop.f32.mrf.mxu0
    %v1172 = vadd.f32 %v1099, %v1171
    %v1173 = vpop.f32.mrf.mxu0
    %v1174 = vadd.f32 %v1101, %v1173
    %1175 = vmatprep.mubr.bf16.mxu0 0
    %1176 = vmatmul.mubr.bf16.gmra.mxu0 %v892
    %v1177 = vpop.f32.mrf.mxu0
    %v1178 = vadd.f32 %v1105, %v1177
    %v1179 = vpop.f32.mrf.mxu0
    %v1180 = vadd.f32 %v1107, %v1179
    %v1181 = vpop.f32.mrf.mxu0
    %v1182 = vadd.f32 %v1109, %v1181
    %v1183 = vpop.f32.mrf.mxu0
    %v1184 = vadd.f32 %v1111, %v1183
    %1185 = vdwg.mxu0
    %v1186 = vld [vmem:[%s3] sm:$0xf]
    %v1187 = vld [vmem:[%s3 + $0x4] sm:$0xf]
    %v1188 = vld [vmem:[%s3 + $0x8] sm:$0xf]
    %v1189 = vpack.c.bf16 %v1152, %v1148
    %v1190 = vpack.c.bf16 %v1154, %v1150
    %v1191 = vpack.c.bf16 %v1162, %v1158
    %v1192 = vpack.c.bf16 %v1164, %v1160
    %v1193 = vpack.c.bf16 %v1172, %v1168
    %v1194 = vpack.c.bf16 %v1174, %v1170
    %v1195 = vpack.c.bf16 %v1182, %v1178
    %v1196 = vpack.c.bf16 %v1184, %v1180
    %v1200 = vunpack.c.l.b16 %v1186
    %v1201 = vunpack.c.l.b16 %v1187
    %v1202 = vunpack.c.l.b16 %v1188
    %v1203 = vpack.c.b16 %v1201, %v1200
    %v1204 = vpack.c.b16 %v1202, %v1202
    %vm1205 = vcmask 523264
    %v1207 = vsel %vm1205, %v1203, 0
    %v1210 = vsel %vm1205, %v1204, 0
    %1212 = vmatprep.subr.bf16.mxu0 0
    %1213 = vmatpush1.bf16.msra.mxu0 0
    %1214 = vmatprep.subr.bf16.mxu0 0
    %1215 = vmatpush1.bf16.msra.mxu0 0
    %1216 = vmatprep.subr.bf16.mxu0 0
    %1217 = vmatpush1.bf16.msra.mxu0 0
    %1218 = vmatprep.subr.bf16.mxu0 0
    %1219 = vmatpush1.bf16.msra.mxu0 0
    %1220 = vmatprep.subr.bf16.mxu0 %v1196
    %1221 = vmatpush1.bf16.msra.mxu0 %v1195
    %1222 = vmatprep.subr.bf16.mxu0 %v1194
    %1223 = vmatpush1.bf16.msra.mxu0 %v1193
    %1224 = vmatprep.subr.bf16.mxu0 %v1192
    %1225 = vmatpush1.bf16.msra.mxu0 %v1191
    %1226 = vmatprep.subr.bf16.mxu0 %v1190
    %1227 = vmatpush1.bf16.msra.mxu0 %v1189
    %1228 = vmatprep.subr.bf16.mxu0 0
    %1229 = vmatpush2.bf16.msra.mxu0 0
    %1230 = vmatprep.subr.bf16.mxu0 0
    %1231 = vmatpush2.bf16.msra.mxu0 0
    %1232 = vmatprep.subr.bf16.mxu0 0
    %1233 = vmatpush2.bf16.msra.mxu0 0
    %1234 = vmatprep.subr.bf16.mxu0 0
    %1235 = vmatpush2.bf16.msra.mxu0 0
    %1236 = vmatprep.subr.bf16.mxu0 0
    %1237 = vmatpush2.bf16.msra.mxu0 0
    %1238 = vmatprep.subr.bf16.mxu0 0
    %1239 = vmatpush2.bf16.msra.mxu0 0
    %1240 = vmatprep.subr.bf16.mxu0 0
    %1241 = vmatpush2.bf16.msra.mxu0 0
    %1242 = vmatprep.subr.bf16.mxu0 0
    %1243 = vmatpush2.bf16.msra.mxu0 0
    %1244 = vmatprep.mubr.bf16.mxu0 0
    %1245 = vmatmul.mubr.bf16.gmra.mxu0 %v1207
    %v1246 = vpop.f32.mrf.mxu0
    %v1247 = vadd.f32 0.0, %v1246
    %v1248 = vpop.f32.mrf.mxu0
    %v1249 = vadd.f32 0.0, %v1248
    %v1250 = vpop.f32.mrf.mxu0
    %v1251 = vadd.f32 0.0, %v1250
    %v1252 = vpop.f32.mrf.mxu0
    %v1253 = vadd.f32 0.0, %v1252
    %1254 = vmatprep.mubr.bf16.mxu0 0
    %1255 = vmatmul.mubr.bf16.gmra.mxu0 %v1210
    %v1256 = vpop.f32.mrf.mxu0
    %v1257 = vadd.f32 0.0, %v1256
    %v1258 = vpop.f32.mrf.mxu0
    %v1259 = vadd.f32 0.0, %v1258
    %v1260 = vpop.f32.mrf.mxu0
    %v1261 = vpop.f32.mrf.mxu0
    %1262 = vdwg.mxu0
    %v1263 = vpack.c.bf16 %v1247, %v1247
    %v1264 = vpack.c.bf16 %v1249, %v1249
    %v1265 = vld [vmem:[%s4] sm:$0xf]
    %v1266 = vld [vmem:[%s4 + $0x4] sm:$0xf]
    %v1267 = vld [vmem:[%s4 + $0x8] sm:$0xf]
    %v1268 = vld [vmem:[%s4 + $0xc] sm:$0xf]
    %v1269 = vld [vmem:[%s4 + $0x10] sm:$0xf]
    %v1270 = vld [vmem:[%s4 + $0x14] sm:$0xf]
    %v1271 = vld [vmem:[%s4 + $0x18] sm:$0xf]
    %v1272 = vld [vmem:[%s4 + $0x1c] sm:$0xf]
    %v1273 = vld [vmem:[%s4 + $0x20] sm:$0xf]
    %v1274 = vld [vmem:[%s4 + $0x24] sm:$0xf]
    %v1275 = vld [vmem:[%s4 + $0x28] sm:$0xf]
    %v1276 = vld [vmem:[%s4 + $0x2c] sm:$0xf]
    %v1277 = vld [vmem:[%s4 + $0x30] sm:$0xf]
    %v1278 = vld [vmem:[%s4 + $0x34] sm:$0xf]
    %v1279 = vld [vmem:[%s4 + $0x38] sm:$0xf]
    %v1280 = vld [vmem:[%s4 + $0x3c] sm:$0xf]
    %v1281 = vld [vmem:[%s4 + $0x40] sm:$0xf]
    %v1282 = vld [vmem:[%s4 + $0x44] sm:$0xf]
    %v1283 = vld [vmem:[%s4 + $0x48] sm:$0xf]
    %v1284 = vld [vmem:[%s4 + $0x4c] sm:$0xf]
    %v1285 = vld [vmem:[%s4 + $0x50] sm:$0xf]
    %v1286 = vld [vmem:[%s4 + $0x54] sm:$0xf]
    %v1287 = vld [vmem:[%s4 + $0x58] sm:$0xf]
    %v1288 = vld [vmem:[%s4 + $0x5c] sm:$0xf]
    %v1289 = vpack.c.bf16 %v1251, %v1251
    %v1290 = vpack.c.bf16 %v1253, %v1253
    %s1291 = scalar_lea.vmem %s4, 96
    %v1292 = vld [vmem:[%s1291] sm:$0xf]
    %v1293 = vld [vmem:[%s1291 + $0x4] sm:$0xf]
    %v1294 = vld [vmem:[%s1291 + $0x8] sm:$0xf]
    %v1295 = vld [vmem:[%s1291 + $0xc] sm:$0xf]
    %v1296 = vld [vmem:[%s1291 + $0x10] sm:$0xf]
    %v1297 = vld [vmem:[%s1291 + $0x14] sm:$0xf]
    %v1298 = vld [vmem:[%s1291 + $0x18] sm:$0xf]
    %v1299 = vld [vmem:[%s1291 + $0x1c] sm:$0xf]
    %v1300 = vld [vmem:[%s1291 + $0x20] sm:$0xf]
    %v1301 = vld [vmem:[%s1291 + $0x24] sm:$0xf]
    %v1302 = vld [vmem:[%s1291 + $0x28] sm:$0xf]
    %v1303 = vld [vmem:[%s1291 + $0x2c] sm:$0xf]
    %v1304 = vld [vmem:[%s1291 + $0x30] sm:$0xf]
    %v1305 = vld [vmem:[%s1291 + $0x34] sm:$0xf]
    %v1306 = vld [vmem:[%s1291 + $0x38] sm:$0xf]
    %v1307 = vld [vmem:[%s1291 + $0x3c] sm:$0xf]
    %v1308 = vld [vmem:[%s1291 + $0x40] sm:$0xf]
    %v1309 = vld [vmem:[%s1291 + $0x44] sm:$0xf]
    %v1310 = vld [vmem:[%s1291 + $0x48] sm:$0xf]
    %v1311 = vld [vmem:[%s1291 + $0x4c] sm:$0xf]
    %v1312 = vld [vmem:[%s1291 + $0x50] sm:$0xf]
    %v1313 = vld [vmem:[%s1291 + $0x54] sm:$0xf]
    %v1314 = vld [vmem:[%s1291 + $0x58] sm:$0xf]
    %v1315 = vld [vmem:[%s1291 + $0x5c] sm:$0xf]
    %v1340 = vunpack.c.l.b16 %v1292
    %v1341 = vunpack.c.l.b16 %v1293
    %v1342 = vunpack.c.l.b16 %v1294
    %v1343 = vunpack.c.l.b16 %v1295
    %v1344 = vunpack.c.l.b16 %v1296
    %v1345 = vunpack.c.l.b16 %v1297
    %v1346 = vunpack.c.l.b16 %v1298
    %v1347 = vunpack.c.l.b16 %v1299
    %v1348 = vunpack.c.l.b16 %v1300
    %v1349 = vunpack.c.l.b16 %v1301
    %v1350 = vunpack.c.l.b16 %v1302
    %v1351 = vunpack.c.l.b16 %v1303
    %v1352 = vunpack.c.l.b16 %v1304
    %v1353 = vunpack.c.l.b16 %v1305
    %v1354 = vunpack.c.l.b16 %v1306
    %v1355 = vunpack.c.l.b16 %v1307
    %v1356 = vunpack.c.l.b16 %v1308
    %v1357 = vunpack.c.l.b16 %v1309
    %v1358 = vunpack.c.l.b16 %v1310
    %v1359 = vunpack.c.l.b16 %v1311
    %v1360 = vunpack.c.l.b16 %v1312
    %v1361 = vunpack.c.l.b16 %v1313
    %v1362 = vunpack.c.l.b16 %v1314
    %v1363 = vunpack.c.l.b16 %v1315
    %v1364 = vpack.c.b16 %v1341, %v1340
    %v1365 = vpack.c.b16 %v1343, %v1342
    %v1366 = vpack.c.b16 %v1345, %v1344
    %v1367 = vpack.c.b16 %v1347, %v1346
    %v1368 = vpack.c.b16 %v1349, %v1348
    %v1369 = vpack.c.b16 %v1351, %v1350
    %v1370 = vpack.c.b16 %v1353, %v1352
    %v1371 = vpack.c.b16 %v1355, %v1354
    %v1372 = vpack.c.b16 %v1357, %v1356
    %v1373 = vpack.c.b16 %v1359, %v1358
    %v1374 = vpack.c.b16 %v1361, %v1360
    %v1375 = vpack.c.b16 %v1363, %v1362
    %v1389 = vsel %vm1205, %v1290, 0
    %1391 = vmatprep.subr.bf16.mxu0 0
    %1392 = vmatpush1.bf16.msra.mxu0 %v1371
    %1393 = vmatprep.subr.bf16.mxu0 0
    %1394 = vmatpush1.bf16.msra.mxu0 %v1370
    %1395 = vmatprep.subr.bf16.mxu0 0
    %1396 = vmatpush1.bf16.msra.mxu0 %v1369
    %1397 = vmatprep.subr.bf16.mxu0 0
    %1398 = vmatpush1.bf16.msra.mxu0 %v1368
    %1399 = vmatprep.subr.bf16.mxu0 0
    %1400 = vmatpush1.bf16.msra.mxu0 %v1367
    %1401 = vmatprep.subr.bf16.mxu0 0
    %1402 = vmatpush1.bf16.msra.mxu0 %v1366
    %1403 = vmatprep.subr.bf16.mxu0 0
    %1404 = vmatpush1.bf16.msra.mxu0 %v1365
    %1405 = vmatprep.subr.bf16.mxu0 0
    %1406 = vmatpush1.bf16.msra.mxu0 %v1364
    %1407 = vmatprep.subr.bf16.mxu0 0
    %1408 = vmatpush2.bf16.msra.mxu0 0
    %1409 = vmatprep.subr.bf16.mxu0 0
    %1410 = vmatpush2.bf16.msra.mxu0 0
    %1411 = vmatprep.subr.bf16.mxu0 0
    %1412 = vmatpush2.bf16.msra.mxu0 0
    %1413 = vmatprep.subr.bf16.mxu0 0
    %1414 = vmatpush2.bf16.msra.mxu0 0
    %1415 = vmatprep.subr.bf16.mxu0 0
    %1416 = vmatpush2.bf16.msra.mxu0 %v1375
    %1417 = vmatprep.subr.bf16.mxu0 0
    %1418 = vmatpush2.bf16.msra.mxu0 %v1374
    %1419 = vmatprep.subr.bf16.mxu0 0
    %1420 = vmatpush2.bf16.msra.mxu0 %v1373
    %1421 = vmatprep.subr.bf16.mxu0 0
    %1422 = vmatpush2.bf16.msra.mxu0 %v1372
    %1423 = vmatprep.mubr.bf16.mxu0 %v1389
    %1424 = vmatmul.mubr.bf16.gmra.mxu0 %v1289
    %v1425 = vpop.f32.mrf.mxu0
    %v1426 = vadd.f32 0.0, %v1425
    %v1427 = vpop.f32.mrf.mxu0
    %v1428 = vpop.f32.mrf.mxu0
    %v1429 = vpop.f32.mrf.mxu0
    %1430 = vdwg.mxu0
    %v1455 = vunpack.c.l.b16 %v1265
    %v1456 = vunpack.c.l.b16 %v1266
    %v1457 = vunpack.c.l.b16 %v1267
    %v1458 = vunpack.c.l.b16 %v1268
    %v1459 = vunpack.c.l.b16 %v1269
    %v1460 = vunpack.c.l.b16 %v1270
    %v1461 = vunpack.c.l.b16 %v1271
    %v1462 = vunpack.c.l.b16 %v1272
    %v1463 = vunpack.c.l.b16 %v1273
    %v1464 = vunpack.c.l.b16 %v1274
    %v1465 = vunpack.c.l.b16 %v1275
    %v1466 = vunpack.c.l.b16 %v1276
    %v1467 = vunpack.c.l.b16 %v1277
    %v1468 = vunpack.c.l.b16 %v1278
    %v1469 = vunpack.c.l.b16 %v1279
    %v1470 = vunpack.c.l.b16 %v1280
    %v1471 = vunpack.c.l.b16 %v1281
    %v1472 = vunpack.c.l.b16 %v1282
    %v1473 = vunpack.c.l.b16 %v1283
    %v1474 = vunpack.c.l.b16 %v1284
    %v1475 = vunpack.c.l.b16 %v1285
    %v1476 = vunpack.c.l.b16 %v1286
    %v1477 = vunpack.c.l.b16 %v1287
    %v1478 = vunpack.c.l.b16 %v1288
    %v1479 = vpack.c.b16 %v1456, %v1455
    %v1480 = vpack.c.b16 %v1458, %v1457
    %v1481 = vpack.c.b16 %v1460, %v1459
    %v1482 = vpack.c.b16 %v1462, %v1461
    %v1483 = vpack.c.b16 %v1464, %v1463
    %v1484 = vpack.c.b16 %v1466, %v1465
    %v1485 = vpack.c.b16 %v1468, %v1467
    %v1486 = vpack.c.b16 %v1470, %v1469
    %v1487 = vpack.c.b16 %v1472, %v1471
    %v1488 = vpack.c.b16 %v1474, %v1473
    %v1489 = vpack.c.b16 %v1476, %v1475
    %v1490 = vpack.c.b16 %v1478, %v1477
    %v1504 = vsel %vm1205, %v1264, 0
    %1506 = vmatprep.subr.bf16.mxu0 0
    %1507 = vmatpush1.bf16.msra.mxu0 %v1486
    %1508 = vmatprep.subr.bf16.mxu0 0
    %1509 = vmatpush1.bf16.msra.mxu0 %v1485
    %1510 = vmatprep.subr.bf16.mxu0 0
    %1511 = vmatpush1.bf16.msra.mxu0 %v1484
    %1512 = vmatprep.subr.bf16.mxu0 0
    %1513 = vmatpush1.bf16.msra.mxu0 %v1483
    %1514 = vmatprep.subr.bf16.mxu0 0
    %1515 = vmatpush1.bf16.msra.mxu0 %v1482
    %1516 = vmatprep.subr.bf16.mxu0 0
    %1517 = vmatpush1.bf16.msra.mxu0 %v1481
    %1518 = vmatprep.subr.bf16.mxu0 0
    %1519 = vmatpush1.bf16.msra.mxu0 %v1480
    %1520 = vmatprep.subr.bf16.mxu0 0
    %1521 = vmatpush1.bf16.msra.mxu0 %v1479
    %1522 = vmatprep.subr.bf16.mxu0 0
    %1523 = vmatpush2.bf16.msra.mxu0 0
    %1524 = vmatprep.subr.bf16.mxu0 0
    %1525 = vmatpush2.bf16.msra.mxu0 0
    %1526 = vmatprep.subr.bf16.mxu0 0
    %1527 = vmatpush2.bf16.msra.mxu0 0
    %1528 = vmatprep.subr.bf16.mxu0 0
    %1529 = vmatpush2.bf16.msra.mxu0 0
    %1530 = vmatprep.subr.bf16.mxu0 0
    %1531 = vmatpush2.bf16.msra.mxu0 %v1490
    %1532 = vmatprep.subr.bf16.mxu0 0
    %1533 = vmatpush2.bf16.msra.mxu0 %v1489
    %1534 = vmatprep.subr.bf16.mxu0 0
    %1535 = vmatpush2.bf16.msra.mxu0 %v1488
    %1536 = vmatprep.subr.bf16.mxu0 0
    %1537 = vmatpush2.bf16.msra.mxu0 %v1487
    %1538 = vmatprep.mubr.bf16.mxu0 %v1504
    %1539 = vmatmul.mubr.bf16.gmra.mxu0 %v1263
    %v1540 = vpop.f32.mrf.mxu0
    %v1541 = vadd.f32 %v1426, %v1540
    %v1542 = vpop.f32.mrf.mxu0
    %v1543 = vpop.f32.mrf.mxu0
    %v1544 = vpop.f32.mrf.mxu0
    %1545 = vdwg.mxu0
    %v1546 = vpack.c.bf16 %v1257, %v1257
    %v1547 = vpack.c.bf16 %v1259, %v1259
    %s1548 = scalar_lea.vmem %s4, 192
    %v1549 = vld [vmem:[%s1548] sm:$0xf]
    %v1550 = vld [vmem:[%s1548 + $0x4] sm:$0xf]
    %v1551 = vld [vmem:[%s1548 + $0x8] sm:$0xf]
    %v1552 = vld [vmem:[%s1548 + $0xc] sm:$0xf]
    %v1553 = vld [vmem:[%s1548 + $0x10] sm:$0xf]
    %v1554 = vld [vmem:[%s1548 + $0x14] sm:$0xf]
    %v1555 = vld [vmem:[%s1548 + $0x18] sm:$0xf]
    %v1556 = vld [vmem:[%s1548 + $0x1c] sm:$0xf]
    %v1557 = vld [vmem:[%s1548 + $0x20] sm:$0xf]
    %v1558 = vld [vmem:[%s1548 + $0x24] sm:$0xf]
    %v1559 = vld [vmem:[%s1548 + $0x28] sm:$0xf]
    %v1560 = vld [vmem:[%s1548 + $0x2c] sm:$0xf]
    %v1561 = vld [vmem:[%s1548 + $0x30] sm:$0xf]
    %v1562 = vld [vmem:[%s1548 + $0x34] sm:$0xf]
    %v1563 = vld [vmem:[%s1548 + $0x38] sm:$0xf]
    %v1564 = vld [vmem:[%s1548 + $0x3c] sm:$0xf]
    %v1565 = vld [vmem:[%s1548 + $0x40] sm:$0xf]
    %v1566 = vld [vmem:[%s1548 + $0x44] sm:$0xf]
    %v1567 = vld [vmem:[%s1548 + $0x48] sm:$0xf]
    %v1568 = vld [vmem:[%s1548 + $0x4c] sm:$0xf]
    %v1569 = vld [vmem:[%s1548 + $0x50] sm:$0xf]
    %v1570 = vld [vmem:[%s1548 + $0x54] sm:$0xf]
    %v1571 = vld [vmem:[%s1548 + $0x58] sm:$0xf]
    %v1572 = vld [vmem:[%s1548 + $0x5c] sm:$0xf]
    %v1597 = vunpack.c.l.b16 %v1549
    %v1598 = vunpack.c.l.b16 %v1550
    %v1599 = vunpack.c.l.b16 %v1551
    %v1600 = vunpack.c.l.b16 %v1552
    %v1601 = vunpack.c.l.b16 %v1553
    %v1602 = vunpack.c.l.b16 %v1554
    %v1603 = vunpack.c.l.b16 %v1555
    %v1604 = vunpack.c.l.b16 %v1556
    %v1605 = vunpack.c.l.b16 %v1557
    %v1606 = vunpack.c.l.b16 %v1558
    %v1607 = vunpack.c.l.b16 %v1559
    %v1608 = vunpack.c.l.b16 %v1560
    %v1609 = vunpack.c.l.b16 %v1561
    %v1610 = vunpack.c.l.b16 %v1562
    %v1611 = vunpack.c.l.b16 %v1563
    %v1612 = vunpack.c.l.b16 %v1564
    %v1613 = vunpack.c.l.b16 %v1565
    %v1614 = vunpack.c.l.b16 %v1566
    %v1615 = vunpack.c.l.b16 %v1567
    %v1616 = vunpack.c.l.b16 %v1568
    %v1617 = vunpack.c.l.b16 %v1569
    %v1618 = vunpack.c.l.b16 %v1570
    %v1619 = vunpack.c.l.b16 %v1571
    %v1620 = vunpack.c.l.b16 %v1572
    %v1621 = vpack.c.b16 %v1598, %v1597
    %v1622 = vpack.c.b16 %v1600, %v1599
    %v1623 = vpack.c.b16 %v1602, %v1601
    %v1624 = vpack.c.b16 %v1604, %v1603
    %v1625 = vpack.c.b16 %v1606, %v1605
    %v1626 = vpack.c.b16 %v1608, %v1607
    %v1627 = vpack.c.b16 %v1610, %v1609
    %v1628 = vpack.c.b16 %v1612, %v1611
    %v1629 = vpack.c.b16 %v1614, %v1613
    %v1630 = vpack.c.b16 %v1616, %v1615
    %v1631 = vpack.c.b16 %v1618, %v1617
    %v1632 = vpack.c.b16 %v1620, %v1619
    %v1646 = vsel %vm1205, %v1547, 0
    %1648 = vmatprep.subr.bf16.mxu0 0
    %1649 = vmatpush1.bf16.msra.mxu0 %v1628
    %1650 = vmatprep.subr.bf16.mxu0 0
    %1651 = vmatpush1.bf16.msra.mxu0 %v1627
    %1652 = vmatprep.subr.bf16.mxu0 0
    %1653 = vmatpush1.bf16.msra.mxu0 %v1626
    %1654 = vmatprep.subr.bf16.mxu0 0
    %1655 = vmatpush1.bf16.msra.mxu0 %v1625
    %1656 = vmatprep.subr.bf16.mxu0 0
    %1657 = vmatpush1.bf16.msra.mxu0 %v1624
    %1658 = vmatprep.subr.bf16.mxu0 0
    %1659 = vmatpush1.bf16.msra.mxu0 %v1623
    %1660 = vmatprep.subr.bf16.mxu0 0
    %1661 = vmatpush1.bf16.msra.mxu0 %v1622
    %1662 = vmatprep.subr.bf16.mxu0 0
    %1663 = vmatpush1.bf16.msra.mxu0 %v1621
    %1664 = vmatprep.subr.bf16.mxu0 0
    %1665 = vmatpush2.bf16.msra.mxu0 0
    %1666 = vmatprep.subr.bf16.mxu0 0
    %1667 = vmatpush2.bf16.msra.mxu0 0
    %1668 = vmatprep.subr.bf16.mxu0 0
    %1669 = vmatpush2.bf16.msra.mxu0 0
    %1670 = vmatprep.subr.bf16.mxu0 0
    %1671 = vmatpush2.bf16.msra.mxu0 0
    %1672 = vmatprep.subr.bf16.mxu0 0
    %1673 = vmatpush2.bf16.msra.mxu0 %v1632
    %1674 = vmatprep.subr.bf16.mxu0 0
    %1675 = vmatpush2.bf16.msra.mxu0 %v1631
    %1676 = vmatprep.subr.bf16.mxu0 0
    %1677 = vmatpush2.bf16.msra.mxu0 %v1630
    %1678 = vmatprep.subr.bf16.mxu0 0
    %1679 = vmatpush2.bf16.msra.mxu0 %v1629
    %1680 = vmatprep.mubr.bf16.mxu0 %v1646
    %1681 = vmatmul.mubr.bf16.gmra.mxu0 %v1546
    %v1682 = vpop.f32.mrf.mxu0
    %v1683 = vadd.f32 0.0, %v1682
    %v1684 = vpop.f32.mrf.mxu0
    %v1685 = vpop.f32.mrf.mxu0
    %v1686 = vpop.f32.mrf.mxu0
    %1687 = vdwg.mxu0
    %v1688 = vadd.f32 %v1541, %v1683
    %v1689 = vld [vmem:[%s5] sm:$0x1]
    %v1691 = vlaneseq
    %v1692 = vshrl.u32 %v1691, 7
    %v1693 = vsub.s32 0, %v1692
    %v1694 = vrot.slane %v1689, %v1693
    %v1696 = vadd.f32 %v1688, %v1694
    %v1698 = vrot.slane %v1696, 2
    %v1700 = vrot.slane %v1696, 4
    %v1702 = vrot.slane %v1696, 6
    %v1704 = vpack.c.bf16 %v1696, %v1696
    %v1705 = vpack.c.bf16 %v1698, %v1698
    %v1706 = vpack.c.bf16 %v1700, %v1700
    %v1707 = vpack.c.bf16 %v1702, %v1702
    %v1708 = vld [vmem:[%s6] sm:$0xf]
    %v1709 = vld [vmem:[%s6 + $0x4] sm:$0xf]
    %v1710 = vld [vmem:[%s6 + $0x8] sm:$0xf]
    %v1711 = vld [vmem:[%s6 + $0xc] sm:$0xf]
    %v1712 = vld [vmem:[%s6 + $0x10] sm:$0xf]
    %v1713 = vld [vmem:[%s6 + $0x14] sm:$0xf]
    %v1714 = vld [vmem:[%s6 + $0x18] sm:$0xf]
    %v1715 = vld [vmem:[%s6 + $0x1c] sm:$0xf]
    %v1716 = vld [vmem:[%s6 + $0x20] sm:$0xf]
    %v1717 = vld [vmem:[%s6 + $0x24] sm:$0xf]
    %v1718 = vld [vmem:[%s6 + $0x28] sm:$0xf]
    %v1719 = vld [vmem:[%s6 + $0x2c] sm:$0xf]
    %v1720 = vld [vmem:[%s6 + $0x30] sm:$0xf]
    %v1721 = vld [vmem:[%s6 + $0x34] sm:$0xf]
    %v1722 = vld [vmem:[%s6 + $0x38] sm:$0xf]
    %v1723 = vld [vmem:[%s6 + $0x3c] sm:$0xf]
    %v1724 = vld [vmem:[%s6 + $0x40] sm:$0xf]
    %v1725 = vld [vmem:[%s6 + $0x44] sm:$0xf]
    %v1726 = vld [vmem:[%s6 + $0x48] sm:$0xf]
    %v1727 = vld [vmem:[%s6 + $0x4c] sm:$0xf]
    %v1728 = vld [vmem:[%s6 + $0x50] sm:$0xf]
    %v1729 = vld [vmem:[%s6 + $0x54] sm:$0xf]
    %v1730 = vld [vmem:[%s6 + $0x58] sm:$0xf]
    %v1731 = vld [vmem:[%s6 + $0x5c] sm:$0xf]
    %v1732 = vld [vmem:[%s6 + $0x60] sm:$0xf]
    %v1733 = vld [vmem:[%s6 + $0x64] sm:$0xf]
    %v1734 = vld [vmem:[%s6 + $0x68] sm:$0xf]
    %v1735 = vld [vmem:[%s6 + $0x6c] sm:$0xf]
    %v1736 = vld [vmem:[%s6 + $0x70] sm:$0xf]
    %v1737 = vld [vmem:[%s6 + $0x74] sm:$0xf]
    %v1738 = vld [vmem:[%s6 + $0x78] sm:$0xf]
    %v1739 = vld [vmem:[%s6 + $0x7c] sm:$0xf]
    %v1740 = vld [vmem:[%s6 + $0x80] sm:$0xf]
    %v1741 = vld [vmem:[%s6 + $0x84] sm:$0xf]
    %v1742 = vld [vmem:[%s6 + $0x88] sm:$0xf]
    %v1743 = vld [vmem:[%s6 + $0x8c] sm:$0xf]
    %v1744 = vld [vmem:[%s6 + $0x90] sm:$0xf]
    %v1745 = vld [vmem:[%s6 + $0x94] sm:$0xf]
    %v1746 = vld [vmem:[%s6 + $0x98] sm:$0xf]
    %v1747 = vld [vmem:[%s6 + $0x9c] sm:$0xf]
    %v1748 = vld [vmem:[%s6 + $0xa0] sm:$0xf]
    %v1749 = vld [vmem:[%s6 + $0xa4] sm:$0xf]
    %v1750 = vld [vmem:[%s6 + $0xa8] sm:$0xf]
    %v1751 = vld [vmem:[%s6 + $0xac] sm:$0xf]
    %v1752 = vld [vmem:[%s6 + $0xb0] sm:$0xf]
    %v1753 = vld [vmem:[%s6 + $0xb4] sm:$0xf]
    %v1754 = vld [vmem:[%s6 + $0xb8] sm:$0xf]
    %v1755 = vld [vmem:[%s6 + $0xbc] sm:$0xf]
    %v1756 = vld [vmem:[%s6 + $0xc0] sm:$0xf]
    %v1757 = vld [vmem:[%s6 + $0xc4] sm:$0xf]
    %v1758 = vld [vmem:[%s6 + $0xc8] sm:$0xf]
    %v1759 = vld [vmem:[%s6 + $0xcc] sm:$0xf]
    %v1760 = vld [vmem:[%s6 + $0xd0] sm:$0xf]
    %v1761 = vld [vmem:[%s6 + $0xd4] sm:$0xf]
    %v1762 = vld [vmem:[%s6 + $0xd8] sm:$0xf]
    %v1763 = vld [vmem:[%s6 + $0xdc] sm:$0xf]
    %v1764 = vld [vmem:[%s6 + $0xe0] sm:$0xf]
    %v1765 = vld [vmem:[%s6 + $0xe4] sm:$0xf]
    %v1766 = vld [vmem:[%s6 + $0xe8] sm:$0xf]
    %v1767 = vld [vmem:[%s6 + $0xec] sm:$0xf]
    %v1768 = vld [vmem:[%s6 + $0xf0] sm:$0xf]
    %v1769 = vld [vmem:[%s6 + $0xf4] sm:$0xf]
    %v1770 = vld [vmem:[%s6 + $0xf8] sm:$0xf]
    %v1771 = vld [vmem:[%s6 + $0xfc] sm:$0xf]
    %v1772 = vld [vmem:[%s7] sm:$0x1]
    %v1774 = vlaneseq
    %v1775 = vshrl.u32 %v1774, 7
    %v1776 = vsub.s32 0, %v1775
    %v1777 = vrot.slane %v1772, %v1776
    %v1843 = vunpack.c.l.b16 %v1708
    %v1844 = vunpack.c.l.b16 %v1709
    %v1845 = vunpack.c.l.b16 %v1710
    %v1846 = vunpack.c.l.b16 %v1711
    %v1847 = vunpack.c.l.b16 %v1712
    %v1848 = vunpack.c.l.b16 %v1713
    %v1849 = vunpack.c.l.b16 %v1714
    %v1850 = vunpack.c.l.b16 %v1715
    %v1851 = vunpack.c.l.b16 %v1716
    %v1852 = vunpack.c.l.b16 %v1717
    %v1853 = vunpack.c.l.b16 %v1718
    %v1854 = vunpack.c.l.b16 %v1719
    %v1855 = vunpack.c.l.b16 %v1720
    %v1856 = vunpack.c.l.b16 %v1721
    %v1857 = vunpack.c.l.b16 %v1722
    %v1858 = vunpack.c.l.b16 %v1723
    %v1859 = vunpack.c.l.b16 %v1724
    %v1860 = vunpack.c.l.b16 %v1725
    %v1861 = vunpack.c.l.b16 %v1726
    %v1862 = vunpack.c.l.b16 %v1727
    %v1863 = vunpack.c.l.b16 %v1728
    %v1864 = vunpack.c.l.b16 %v1729
    %v1865 = vunpack.c.l.b16 %v1730
    %v1866 = vunpack.c.l.b16 %v1731
    %v1867 = vunpack.c.l.b16 %v1732
    %v1868 = vunpack.c.l.b16 %v1733
    %v1869 = vunpack.c.l.b16 %v1734
    %v1870 = vunpack.c.l.b16 %v1735
    %v1871 = vunpack.c.l.b16 %v1736
    %v1872 = vunpack.c.l.b16 %v1737
    %v1873 = vunpack.c.l.b16 %v1738
    %v1874 = vunpack.c.l.b16 %v1739
    %v1875 = vunpack.c.l.b16 %v1740
    %v1876 = vunpack.c.l.b16 %v1741
    %v1877 = vunpack.c.l.b16 %v1742
    %v1878 = vunpack.c.l.b16 %v1743
    %v1879 = vunpack.c.l.b16 %v1744
    %v1880 = vunpack.c.l.b16 %v1745
    %v1881 = vunpack.c.l.b16 %v1746
    %v1882 = vunpack.c.l.b16 %v1747
    %v1883 = vunpack.c.l.b16 %v1748
    %v1884 = vunpack.c.l.b16 %v1749
    %v1885 = vunpack.c.l.b16 %v1750
    %v1886 = vunpack.c.l.b16 %v1751
    %v1887 = vunpack.c.l.b16 %v1752
    %v1888 = vunpack.c.l.b16 %v1753
    %v1889 = vunpack.c.l.b16 %v1754
    %v1890 = vunpack.c.l.b16 %v1755
    %v1891 = vunpack.c.l.b16 %v1756
    %v1892 = vunpack.c.l.b16 %v1757
    %v1893 = vunpack.c.l.b16 %v1758
    %v1894 = vunpack.c.l.b16 %v1759
    %v1895 = vunpack.c.l.b16 %v1760
    %v1896 = vunpack.c.l.b16 %v1761
    %v1897 = vunpack.c.l.b16 %v1762
    %v1898 = vunpack.c.l.b16 %v1763
    %v1899 = vunpack.c.l.b16 %v1764
    %v1900 = vunpack.c.l.b16 %v1765
    %v1901 = vunpack.c.l.b16 %v1766
    %v1902 = vunpack.c.l.b16 %v1767
    %v1903 = vunpack.c.l.b16 %v1768
    %v1904 = vunpack.c.l.b16 %v1769
    %v1905 = vunpack.c.l.b16 %v1770
    %v1906 = vunpack.c.l.b16 %v1771
    %v1907 = vpack.c.b16 %v1844, %v1843
    %v1908 = vpack.c.b16 %v1846, %v1845
    %v1909 = vpack.c.b16 %v1848, %v1847
    %v1910 = vpack.c.b16 %v1850, %v1849
    %v1911 = vpack.c.b16 %v1852, %v1851
    %v1912 = vpack.c.b16 %v1854, %v1853
    %v1913 = vpack.c.b16 %v1856, %v1855
    %v1914 = vpack.c.b16 %v1858, %v1857
    %v1915 = vpack.c.b16 %v1860, %v1859
    %v1916 = vpack.c.b16 %v1862, %v1861
    %v1917 = vpack.c.b16 %v1864, %v1863
    %v1918 = vpack.c.b16 %v1866, %v1865
    %v1919 = vpack.c.b16 %v1868, %v1867
    %v1920 = vpack.c.b16 %v1870, %v1869
    %v1921 = vpack.c.b16 %v1872, %v1871
    %v1922 = vpack.c.b16 %v1874, %v1873
    %v1923 = vpack.c.b16 %v1876, %v1875
    %v1924 = vpack.c.b16 %v1878, %v1877
    %v1925 = vpack.c.b16 %v1880, %v1879
    %v1926 = vpack.c.b16 %v1882, %v1881
    %v1927 = vpack.c.b16 %v1884, %v1883
    %v1928 = vpack.c.b16 %v1886, %v1885
    %v1929 = vpack.c.b16 %v1888, %v1887
    %v1930 = vpack.c.b16 %v1890, %v1889
    %v1931 = vpack.c.b16 %v1892, %v1891
    %v1932 = vpack.c.b16 %v1894, %v1893
    %v1933 = vpack.c.b16 %v1896, %v1895
    %v1934 = vpack.c.b16 %v1898, %v1897
    %v1935 = vpack.c.b16 %v1900, %v1899
    %v1936 = vpack.c.b16 %v1902, %v1901
    %v1937 = vpack.c.b16 %v1904, %v1903
    %v1938 = vpack.c.b16 %v1906, %v1905
    %1971 = vmatprep.subr.bf16.mxu0 0
    %1972 = vmatpush1.bf16.msra.mxu0 %v1914
    %1973 = vmatprep.subr.bf16.mxu0 0
    %1974 = vmatpush1.bf16.msra.mxu0 %v1913
    %1975 = vmatprep.subr.bf16.mxu0 0
    %1976 = vmatpush1.bf16.msra.mxu0 %v1912
    %1977 = vmatprep.subr.bf16.mxu0 0
    %1978 = vmatpush1.bf16.msra.mxu0 %v1911
    %1979 = vmatprep.subr.bf16.mxu0 0
    %1980 = vmatpush1.bf16.msra.mxu0 %v1910
    %1981 = vmatprep.subr.bf16.mxu0 0
    %1982 = vmatpush1.bf16.msra.mxu0 %v1909
    %1983 = vmatprep.subr.bf16.mxu0 0
    %1984 = vmatpush1.bf16.msra.mxu0 %v1908
    %1985 = vmatprep.subr.bf16.mxu0 0
    %1986 = vmatpush1.bf16.msra.mxu0 %v1907
    %1987 = vmatprep.subr.bf16.mxu0 0
    %1988 = vmatpush2.bf16.msra.mxu0 %v1922
    %1989 = vmatprep.subr.bf16.mxu0 0
    %1990 = vmatpush2.bf16.msra.mxu0 %v1921
    %1991 = vmatprep.subr.bf16.mxu0 0
    %1992 = vmatpush2.bf16.msra.mxu0 %v1920
    %1993 = vmatprep.subr.bf16.mxu0 0
    %1994 = vmatpush2.bf16.msra.mxu0 %v1919
    %1995 = vmatprep.subr.bf16.mxu0 0
    %1996 = vmatpush2.bf16.msra.mxu0 %v1918
    %1997 = vmatprep.subr.bf16.mxu0 0
    %1998 = vmatpush2.bf16.msra.mxu0 %v1917
    %1999 = vmatprep.subr.bf16.mxu0 0
    %2000 = vmatpush2.bf16.msra.mxu0 %v1916
    %2001 = vmatprep.subr.bf16.mxu0 0
    %2002 = vmatpush2.bf16.msra.mxu0 %v1915
    %2003 = vmatprep.mubr.bf16.mxu0 %v1705
    %2004 = vmatmul.mubr.bf16.gmra.mxu0 %v1704
    %v2005 = vpop.f32.mrf.mxu0
    %v2006 = vadd.f32 %v1777, %v2005
    %v2007 = vpop.f32.mrf.mxu0
    %v2008 = vpop.f32.mrf.mxu0
    %v2009 = vpop.f32.mrf.mxu0
    %2010 = vdwg.mxu0
    %2011 = vmatprep.subr.bf16.mxu0 0
    %2012 = vmatpush1.bf16.msra.mxu0 %v1930
    %2013 = vmatprep.subr.bf16.mxu0 0
    %2014 = vmatpush1.bf16.msra.mxu0 %v1929
    %2015 = vmatprep.subr.bf16.mxu0 0
    %2016 = vmatpush1.bf16.msra.mxu0 %v1928
    %2017 = vmatprep.subr.bf16.mxu0 0
    %2018 = vmatpush1.bf16.msra.mxu0 %v1927
    %2019 = vmatprep.subr.bf16.mxu0 0
    %2020 = vmatpush1.bf16.msra.mxu0 %v1926
    %2021 = vmatprep.subr.bf16.mxu0 0
    %2022 = vmatpush1.bf16.msra.mxu0 %v1925
    %2023 = vmatprep.subr.bf16.mxu0 0
    %2024 = vmatpush1.bf16.msra.mxu0 %v1924
    %2025 = vmatprep.subr.bf16.mxu0 0
    %2026 = vmatpush1.bf16.msra.mxu0 %v1923
    %2027 = vmatprep.subr.bf16.mxu0 0
    %2028 = vmatpush2.bf16.msra.mxu0 %v1938
    %2029 = vmatprep.subr.bf16.mxu0 0
    %2030 = vmatpush2.bf16.msra.mxu0 %v1937
    %2031 = vmatprep.subr.bf16.mxu0 0
    %2032 = vmatpush2.bf16.msra.mxu0 %v1936
    %2033 = vmatprep.subr.bf16.mxu0 0
    %2034 = vmatpush2.bf16.msra.mxu0 %v1935
    %2035 = vmatprep.subr.bf16.mxu0 0
    %2036 = vmatpush2.bf16.msra.mxu0 %v1934
    %2037 = vmatprep.subr.bf16.mxu0 0
    %2038 = vmatpush2.bf16.msra.mxu0 %v1933
    %2039 = vmatprep.subr.bf16.mxu0 0
    %2040 = vmatpush2.bf16.msra.mxu0 %v1932
    %2041 = vmatprep.subr.bf16.mxu0 0
    %2042 = vmatpush2.bf16.msra.mxu0 %v1931
    %2043 = vmatprep.mubr.bf16.mxu0 %v1707
    %2044 = vmatmul.mubr.bf16.gmra.mxu0 %v1706
    %v2045 = vpop.f32.mrf.mxu0
    %v2046 = vadd.f32 %v2006, %v2045
    %v2047 = vpop.f32.mrf.mxu0
    %v2048 = vpop.f32.mrf.mxu0
    %v2049 = vpop.f32.mrf.mxu0
    %2050 = vdwg.mxu0
    %v2051 = vmax.f32 %v2046, 0.0
    %v2052 = vpack.c.bf16 %v2051, %v2051
    %v2053 = vld [vmem:[%s8] sm:$0xf]
    %v2054 = vld [vmem:[%s8 + $0x4] sm:$0xf]
    %v2055 = vld [vmem:[%s8 + $0x8] sm:$0xf]
    %v2056 = vld [vmem:[%s8 + $0xc] sm:$0xf]
    %v2057 = vld [vmem:[%s8 + $0x10] sm:$0xf]
    %v2058 = vld [vmem:[%s8 + $0x14] sm:$0xf]
    %v2059 = vld [vmem:[%s8 + $0x18] sm:$0xf]
    %v2060 = vld [vmem:[%s8 + $0x1c] sm:$0xf]
    %v2061 = vld [vmem:[%s8 + $0x20] sm:$0xf]
    %v2062 = vld [vmem:[%s8 + $0x24] sm:$0xf]
    %v2063 = vld [vmem:[%s8 + $0x28] sm:$0xf]
    %v2064 = vld [vmem:[%s8 + $0x2c] sm:$0xf]
    %v2065 = vld [vmem:[%s8 + $0x30] sm:$0xf]
    %v2066 = vld [vmem:[%s8 + $0x34] sm:$0xf]
    %v2067 = vld [vmem:[%s8 + $0x38] sm:$0xf]
    %v2068 = vld [vmem:[%s8 + $0x3c] sm:$0xf]
    %v2069 = vld [vmem:[%s9] sm:$0x1]
    %v2071 = vlaneseq
    %v2072 = vshrl.u32 %v2071, 7
    %v2073 = vsub.s32 0, %v2072
    %v2074 = vrot.slane %v2069, %v2073
    %v2092 = vunpack.c.l.b16 %v2053
    %v2093 = vunpack.c.l.b16 %v2054
    %v2094 = vunpack.c.l.b16 %v2055
    %v2095 = vunpack.c.l.b16 %v2056
    %v2096 = vunpack.c.l.b16 %v2057
    %v2097 = vunpack.c.l.b16 %v2058
    %v2098 = vunpack.c.l.b16 %v2059
    %v2099 = vunpack.c.l.b16 %v2060
    %v2100 = vunpack.c.l.b16 %v2061
    %v2101 = vunpack.c.l.b16 %v2062
    %v2102 = vunpack.c.l.b16 %v2063
    %v2103 = vunpack.c.l.b16 %v2064
    %v2104 = vunpack.c.l.b16 %v2065
    %v2105 = vunpack.c.l.b16 %v2066
    %v2106 = vunpack.c.l.b16 %v2067
    %v2107 = vunpack.c.l.b16 %v2068
    %v2108 = vpack.c.b16 %v2093, %v2092
    %v2109 = vpack.c.b16 %v2095, %v2094
    %v2110 = vpack.c.b16 %v2097, %v2096
    %v2111 = vpack.c.b16 %v2099, %v2098
    %v2112 = vpack.c.b16 %v2101, %v2100
    %v2113 = vpack.c.b16 %v2103, %v2102
    %v2114 = vpack.c.b16 %v2105, %v2104
    %v2115 = vpack.c.b16 %v2107, %v2106
    %2124 = vmatprep.subr.bf16.mxu0 0
    %2125 = vmatpush1.bf16.msra.mxu0 %v2115
    %2126 = vmatprep.subr.bf16.mxu0 0
    %2127 = vmatpush1.bf16.msra.mxu0 %v2114
    %2128 = vmatprep.subr.bf16.mxu0 0
    %2129 = vmatpush1.bf16.msra.mxu0 %v2113
    %2130 = vmatprep.subr.bf16.mxu0 0
    %2131 = vmatpush1.bf16.msra.mxu0 %v2112
    %2132 = vmatprep.subr.bf16.mxu0 0
    %2133 = vmatpush1.bf16.msra.mxu0 %v2111
    %2134 = vmatprep.subr.bf16.mxu0 0
    %2135 = vmatpush1.bf16.msra.mxu0 %v2110
    %2136 = vmatprep.subr.bf16.mxu0 0
    %2137 = vmatpush1.bf16.msra.mxu0 %v2109
    %2138 = vmatprep.subr.bf16.mxu0 0
    %2139 = vmatpush1.bf16.msra.mxu0 %v2108
    %2140 = vmatprep.subr.bf16.mxu0 0
    %2141 = vmatpush2.bf16.msra.mxu0 0
    %2142 = vmatprep.subr.bf16.mxu0 0
    %2143 = vmatpush2.bf16.msra.mxu0 0
    %2144 = vmatprep.subr.bf16.mxu0 0
    %2145 = vmatpush2.bf16.msra.mxu0 0
    %2146 = vmatprep.subr.bf16.mxu0 0
    %2147 = vmatpush2.bf16.msra.mxu0 0
    %2148 = vmatprep.subr.bf16.mxu0 0
    %2149 = vmatpush2.bf16.msra.mxu0 0
    %2150 = vmatprep.subr.bf16.mxu0 0
    %2151 = vmatpush2.bf16.msra.mxu0 0
    %2152 = vmatprep.subr.bf16.mxu0 0
    %2153 = vmatpush2.bf16.msra.mxu0 0
    %2154 = vmatprep.subr.bf16.mxu0 0
    %2155 = vmatpush2.bf16.msra.mxu0 0
    %2156 = vmatprep.mubr.bf16.mxu0 0
    %2157 = vmatmul.mubr.bf16.gmra.mxu0 %v2052
    %v2158 = vpop.f32.mrf.mxu0
    %v2159 = vadd.f32 %v2074, %v2158
    %v2160 = vpop.f32.mrf.mxu0
    %v2161 = vpop.f32.mrf.mxu0
    %v2162 = vpop.f32.mrf.mxu0
    %2163 = vdwg.mxu0
    %v2164 = vmax.f32 %v2159, 0.0
    %v2165 = vpack.c.bf16 %v2164, %v2164
    %v2166 = vld [vmem:[%s10] sm:$0xf]
    %v2167 = vld [vmem:[%s10 + $0x4] sm:$0xf]
    %v2168 = vld [vmem:[%s10 + $0x8] sm:$0xf]
    %v2169 = vld [vmem:[%s10 + $0xc] sm:$0xf]
    %v2170 = vld [vmem:[%s10 + $0x10] sm:$0xf]
    %v2171 = vld [vmem:[%s10 + $0x14] sm:$0xf]
    %v2172 = vld [vmem:[%s10 + $0x18] sm:$0xf]
    %v2173 = vld [vmem:[%s10 + $0x1c] sm:$0xf]
    %v2174 = vld [vmem:[%s11] sm:$0x1]
    %v2176 = vlaneseq
    %v2177 = vshrl.u32 %v2176, 7
    %v2178 = vsub.s32 0, %v2177
    %v2179 = vrot.slane %v2174, %v2178
    %v2189 = vunpack.c.l.b16 %v2166
    %v2190 = vunpack.c.l.b16 %v2167
    %v2191 = vunpack.c.l.b16 %v2168
    %v2192 = vunpack.c.l.b16 %v2169
    %v2193 = vunpack.c.l.b16 %v2170
    %v2194 = vunpack.c.l.b16 %v2171
    %v2195 = vunpack.c.l.b16 %v2172
    %v2196 = vunpack.c.l.b16 %v2173
    %v2197 = vpack.c.b16 %v2190, %v2189
    %v2198 = vpack.c.b16 %v2192, %v2191
    %v2199 = vpack.c.b16 %v2194, %v2193
    %v2200 = vpack.c.b16 %v2196, %v2195
    %v2206 = vsel %vm1205, %v2165, 0
    %2208 = vmatprep.subr.bf16.mxu0 0
    %2209 = vmatpush1.bf16.msra.mxu0 0
    %2210 = vmatprep.subr.bf16.mxu0 0
    %2211 = vmatpush1.bf16.msra.mxu0 0
    %2212 = vmatprep.subr.bf16.mxu0 0
    %2213 = vmatpush1.bf16.msra.mxu0 0
    %2214 = vmatprep.subr.bf16.mxu0 0
    %2215 = vmatpush1.bf16.msra.mxu0 0
    %2216 = vmatprep.subr.bf16.mxu0 0
    %2217 = vmatpush1.bf16.msra.mxu0 %v2200
    %2218 = vmatprep.subr.bf16.mxu0 0
    %2219 = vmatpush1.bf16.msra.mxu0 %v2199
    %2220 = vmatprep.subr.bf16.mxu0 0
    %2221 = vmatpush1.bf16.msra.mxu0 %v2198
    %2222 = vmatprep.subr.bf16.mxu0 0
    %2223 = vmatpush1.bf16.msra.mxu0 %v2197
    %2224 = vmatprep.subr.bf16.mxu0 0
    %2225 = vmatpush2.bf16.msra.mxu0 0
    %2226 = vmatprep.subr.bf16.mxu0 0
    %2227 = vmatpush2.bf16.msra.mxu0 0
    %2228 = vmatprep.subr.bf16.mxu0 0
    %2229 = vmatpush2.bf16.msra.mxu0 0
    %2230 = vmatprep.subr.bf16.mxu0 0
    %2231 = vmatpush2.bf16.msra.mxu0 0
    %2232 = vmatprep.subr.bf16.mxu0 0
    %2233 = vmatpush2.bf16.msra.mxu0 0
    %2234 = vmatprep.subr.bf16.mxu0 0
    %2235 = vmatpush2.bf16.msra.mxu0 0
    %2236 = vmatprep.subr.bf16.mxu0 0
    %2237 = vmatpush2.bf16.msra.mxu0 0
    %2238 = vmatprep.subr.bf16.mxu0 0
    %2239 = vmatpush2.bf16.msra.mxu0 0
    %2240 = vmatprep.mubr.bf16.mxu0 0
    %2241 = vmatmul.mubr.bf16.gmra.mxu0 %v2206
    %v2242 = vpop.f32.mrf.mxu0
    %v2243 = vadd.f32 %v2179, %v2242
    %v2244 = vpop.f32.mrf.mxu0
    %v2245 = vpop.f32.mrf.mxu0
    %v2246 = vpop.f32.mrf.mxu0
    %2247 = vdwg.mxu0
    %v2248 = vmax.f32 %v2243, 0.0
    %v2249 = vpack.c.bf16 %v2248, %v2248
    %v2250 = vld [vmem:[%s12] sm:$0xf]
    %v2251 = vld [vmem:[%s12 + $0x4] sm:$0xf]
    %v2252 = vld [vmem:[%s12 + $0x8] sm:$0xf]
    %v2253 = vld [vmem:[%s12 + $0xc] sm:$0xf]
    %v2254 = vld [vmem:[%s13] sm:$0x1]
    %v2256 = vlaneseq
    %v2257 = vshrl.u32 %v2256, 7
    %v2258 = vsub.s32 0, %v2257
    %v2259 = vrot.slane %v2254, %v2258
    %v2265 = vunpack.c.l.b16 %v2250
    %v2266 = vunpack.c.l.b16 %v2251
    %v2267 = vunpack.c.l.b16 %v2252
    %v2268 = vunpack.c.l.b16 %v2253
    %v2269 = vpack.c.b16 %v2266, %v2265
    %v2270 = vpack.c.b16 %v2268, %v2267
    %vm2273 = vcmask 261120
    %v2275 = vsel %vm2273, %v2249, 0
    %2277 = vmatprep.subr.bf16.mxu0 0
    %2278 = vmatpush1.bf16.msra.mxu0 0
    %2279 = vmatprep.subr.bf16.mxu0 0
    %2280 = vmatpush1.bf16.msra.mxu0 0
    %2281 = vmatprep.subr.bf16.mxu0 0
    %2282 = vmatpush1.bf16.msra.mxu0 0
    %2283 = vmatprep.subr.bf16.mxu0 0
    %2284 = vmatpush1.bf16.msra.mxu0 0
    %2285 = vmatprep.subr.bf16.mxu0 0
    %2286 = vmatpush1.bf16.msra.mxu0 0
    %2287 = vmatprep.subr.bf16.mxu0 0
    %2288 = vmatpush1.bf16.msra.mxu0 0
    %2289 = vmatprep.subr.bf16.mxu0 0
    %2290 = vmatpush1.bf16.msra.mxu0 %v2270
    %2291 = vmatprep.subr.bf16.mxu0 0
    %2292 = vmatpush1.bf16.msra.mxu0 %v2269
    %2293 = vmatprep.subr.bf16.mxu0 0
    %2294 = vmatpush2.bf16.msra.mxu0 0
    %2295 = vmatprep.subr.bf16.mxu0 0
    %2296 = vmatpush2.bf16.msra.mxu0 0
    %2297 = vmatprep.subr.bf16.mxu0 0
    %2298 = vmatpush2.bf16.msra.mxu0 0
    %2299 = vmatprep.subr.bf16.mxu0 0
    %2300 = vmatpush2.bf16.msra.mxu0 0
    %2301 = vmatprep.subr.bf16.mxu0 0
    %2302 = vmatpush2.bf16.msra.mxu0 0
    %2303 = vmatprep.subr.bf16.mxu0 0
    %2304 = vmatpush2.bf16.msra.mxu0 0
    %2305 = vmatprep.subr.bf16.mxu0 0
    %2306 = vmatpush2.bf16.msra.mxu0 0
    %2307 = vmatprep.subr.bf16.mxu0 0
    %2308 = vmatpush2.bf16.msra.mxu0 0
    %2309 = vmatprep.mubr.bf16.mxu0 0
    %2310 = vmatmul.mubr.bf16.gmra.mxu0 %v2275
    %v2311 = vpop.f32.mrf.mxu0
    %v2312 = vadd.f32 %v2259, %v2311
    %v2313 = vpop.f32.mrf.mxu0
    %v2314 = vpop.f32.mrf.mxu0
    %v2315 = vpop.f32.mrf.mxu0
    %2316 = vdwg.mxu0
    %v2317 = vmax.f32 %v2312, 0.0
    %vm2318 = vcmask 74752
    %2319 = vst.msk [vmem:[#allocation2] sm:$0x3] %vm2318, %v2317
    // Predicated region
    $region58: #{cnn2_forward.1} parent=1 // pred_check
      _
    $region59: #{cnn2_forward.1} parent=1 // pred_check_branch
      %2321 = sbr.rel (0) target = $region61
    $region60: #{cnn2_forward.1} parent=1 // pred_region
      %s2323 = ssub.s32 32, 32
      %2324 = vsyncadd [#allocation3], %s2323
      %s2326 = sshll.u32 [#allocation2], 4
      %s2327 = int_to_ptr.vmem [resolvable:$true] %s2326
      %2329 = dma.vmem_to_hbm [thread:$0]  %s2327, 32, %s14, [#allocation3]
    $region61: #{cnn2_forward.1} parent=1 // pred_fallthru
      _
    // Predicated region
    $region62: #{cnn2_forward.1} parent=1 // pred_check
      _
    $region63: #{cnn2_forward.1} parent=1 // pred_check_branch
      %2331 = sbr.rel (0) target = $region65
    $region64: #{cnn2_forward.1} parent=1 // pred_region
      %2332 = dma.done [#allocation3], 32
    $region65: #{cnn2_forward.1} parent=1 // pred_fallthru
      _
    %2333 = vsyncpa [#allocation3], 1

</llo_original>
